<compile_context>
chip_gen: v6e
topology: v6e:2x2x1
jax: 0.10.0
libtpu: 0.0.40
codegen_flags: <defaults>
</compile_context>

<pallas_src>
import jax
import jax.numpy as jnp
import numpy as np
from jax.experimental import pallas as pl
from jax.experimental.pallas import tpu as pltpu

# ---- synthetic GSA config (mirrors __init__) --------------------------------
N_FEATURES = 4
PAST = 1                        # opt.past_frames  -> center index
FUTURE = 1                      # opt.future_frames
C = 5 * N_FEATURES              # per-frame channel count (5 * n_features)
RELATED = FUTURE + 1 + PAST     # related_f
CENTER = PAST
OTHER_IDX = tuple(i for i in range(RELATED) if i != CENTER)   # static, len = F-1


# ---- fused Pallas kernel ----------------------------------------------------
def _gsa_fused_kernel(hs_ref,
                      w1t_ref, w1b_ref, b1_ref, w2_ref, b2_ref,
                      wp12t_ref, wp12b_ref, bp12_ref,
                      wc_ref, bc_ref,
                      wfr_ref, bf_ref,
                      out_ref):
    """Whole GSA forward for one batch element.

    hs_ref:   (F, 1, HW, C) VMEM block (all frames of this batch element)
    wfr_ref:  (RELATED, C, RC) fusion weight reshaped into per-frame slabs
    out_ref:  (1, HW, RC)
    """
    fref = hs_ref[CENTER, 0]                                        # (HW, C)

    # --- adaptive_avg_pool2d((1,1)) == mean over pixels ----------------------
    pooled_f = jnp.mean(fref, axis=0, keepdims=True)                # (1, C)
    pooled_h = jnp.concatenate(
        [jnp.mean(hs_ref[i, 0], axis=0, keepdims=True) for i in OTHER_IDX],
        axis=0)                                                     # (F-1, C)

    # --- F_f squeeze-excite, batched over the F-1 non-center frames ----------
    # (pooled_cor @ w1) == pooled_f @ w1_top + pooled_h @ w1_bot  (split concat)
    h1 = (jnp.dot(pooled_f, w1t_ref[...], preferred_element_type=jnp.float32)
          + jnp.dot(pooled_h, w1b_ref[...], preferred_element_type=jnp.float32)
          + b1_ref[...])                                            # (F-1, 4C)
    h1 = jnp.maximum(h1, 0.0)                                       # ReLU
    gate = jax.nn.sigmoid(
        jnp.dot(h1, w2_ref[...], preferred_element_type=jnp.float32)
        + b2_ref[...])                                              # (F-1, 2C)

    # --- fusion accumulator, seeded with the f_ref channel slab + bias -------
    acc = (jnp.dot(fref, wfr_ref[len(OTHER_IDX)],
                   preferred_element_type=jnp.float32)
           + bf_ref[...])                                           # (HW, RC)

    # f_ref-side half of the (folded) F_p conv pair, shared across frames
    p_shared = (jnp.dot(fref, wp12t_ref[...],
                        preferred_element_type=jnp.float32)
                + bp12_ref[...])                                    # (HW, 2C)

    for slot, i in enumerate(OTHER_IDX):                            # static unroll
        hi = hs_ref[i, 0]                                           # (HW, C)
        # F_p(cor) with wp1@wp2 folded and concat split
        p = p_shared + jnp.dot(hi, wp12b_ref[...],
                               preferred_element_type=jnp.float32)  # (HW, 2C)
        m = gate[slot:slot + 1, :] * p                              # gated
        # condense: conv1x1(2C -> C)
        branch = (jnp.dot(m, wc_ref[...],
                          preferred_element_type=jnp.float32)
                  + bc_ref[...])                                    # (HW, C)
        # fusion contribution of this frame's channel slab
        acc = acc + jnp.dot(branch, wfr_ref[slot],
                            preferred_element_type=jnp.float32)

    out_ref[0] = acc.astype(out_ref.dtype)


# ---- wrapper ----------------------------------------------------------------
def gsa_forward(hs, params):
    """hs: (F, B, HW, C) float32, channels-last flattened layout."""
    F_, B, HW, Cc = hs.shape
    RC = RELATED * Cc

    # Offline, exact weight rewrites (done once at trace time):
    #  - fold the two linear F_p convs:  y = x @ (wp1@wp2) + (bp1@wp2 + bp2)
    #  - split every weight consuming cor=[f_ref, hi] into its two halves
    #  - reshape the fusion weight into per-frame (C, RC) slabs
    wp12 = params["wp1"] @ params["wp2"]                    # (2C, 2C)
    bp12 = params["bp1"] @ params["wp2"] + params["bp2"]    # (1, 2C)
    w1t, w1b = params["w1"][:Cc], params["w1"][Cc:]         # (C, 4C) each
    wp12t, wp12b = wp12[:Cc], wp12[Cc:]                     # (C, 2C) each
    wfr = params["wf"].reshape(RELATED, Cc, RC)             # (F, C, RC)

    weights = (w1t, w1b, params["b1"], params["w2"], params["b2"],
               wp12t, wp12b, bp12, params["wc"], params["bc"],
               wfr, params["bf"])

    def full(a):                   # whole-array (untiled) spec for weights
        return pl.BlockSpec(a.shape, lambda b, _n=a.ndim: (0,) * _n)

    return pl.pallas_call(
        _gsa_fused_kernel,
        out_shape=jax.ShapeDtypeStruct((B, HW, RC), jnp.float32),
        grid=(B,),
        in_specs=[pl.BlockSpec((F_, 1, HW, Cc), lambda b: (0, b, 0, 0))]
                 + [full(w) for w in weights],
        out_specs=pl.BlockSpec((1, HW, RC), lambda b: (b, 0, 0)),
        compiler_params=pltpu.CompilerParams(
            dimension_semantics=("parallel",)),
    )(hs, *weights)


# ---- pure-JAX reference (unfused weights; checks the folding is exact) ------
def gsa_reference(hs, params):
    F_, B, HW, Cc = hs.shape
    f_ref = hs[CENTER]
    cor_l = []
    for i in range(F_):
        if i == CENTER:
            continue
        cor = jnp.concatenate([f_ref, hs[i]], axis=-1)            # (B, HW, 2C)
        w = jnp.mean(cor, axis=1)                                 # (B, 2C)
        w = jnp.maximum(w @ params["w1"] + params["b1"], 0.0)
        w = jax.nn.sigmoid(w @ params["w2"] + params["b2"])
        p = cor @ params["wp1"] + params["bp1"]
        p = p @ params["wp2"] + params["bp2"]
        m = w[:, None, :] * p
        cor_l.append(m @ params["wc"] + params["bc"])
    cor_l.append(f_ref)
    x = jnp.concatenate(cor_l, axis=-1)
    return x @ params["wf"] + params["bf"]


# ---- deterministic parameter init -------------------------------------------
def init_params(key):
    C2, C4 = 2 * C, 4 * C
    RC = RELATED * C
    ks = jax.random.split(key, 12)

    def w(k, shape):
        return jax.random.normal(k, shape, jnp.float32) * 0.05

    return dict(
        w1=w(ks[0], (C2, C4)),  b1=w(ks[1], (1, C4)),      # F_f Linear 1
        w2=w(ks[2], (C4, C2)),  b2=w(ks[3], (1, C2)),      # F_f Linear 2
        wp1=w(ks[4], (C2, C4)), bp1=w(ks[5], (1, C4)),     # F_p conv1x1 1
        wp2=w(ks[6], (C4, C2)), bp2=w(ks[7], (1, C2)),     # F_p conv1x1 2
        wc=w(ks[8], (C2, C)),   bc=w(ks[9], (1, C)),       # condense
        wf=w(ks[10], (RC, RC)), bf=w(ks[11], (1, RC)),     # fusion
    )


if __name__ == "__main__":
    key = jax.random.PRNGKey(0)
    kp, kx = jax.random.split(key)
    params = init_params(kp)

    B, H, W = 2, 8, 8
    F_ = RELATED                       # nframes == related_f
    # PyTorch-style NCHW inputs: F_ tensors of shape (B, C, H, W)
    hs_nchw = jax.random.normal(kx, (F_, B, C, H, W), jnp.float32)
    # layout transform: NCHW -> (B, H*W, C) per frame
    hs = jnp.transpose(hs_nchw, (0, 1, 3, 4, 2)).reshape(F_, B, H * W, C)

    out = gsa_forward(hs, params)
    out = jax.block_until_ready(out)

    ref = jax.block_until_ready(gsa_reference(hs, params))
    np.testing.assert_allclose(np.asarray(out), np.asarray(ref), rtol=2e-2, atol=2e-2)

    assert out.shape == (B, H * W, RELATED * C)
    print("KERNEL_OK")
</pallas_src>

<mosaic_0001>
module attributes {stable_mosaic.version = 11 : i64} {
  func.func @_gsa_fused_kernel(%arg0: i32, %arg1: memref<3x1x64x20xf32, #tpu.memory_space<vmem>>, %arg2: memref<20x80xf32, #tpu.memory_space<vmem>>, %arg3: memref<20x80xf32, #tpu.memory_space<vmem>>, %arg4: memref<1x80xf32, #tpu.memory_space<vmem>>, %arg5: memref<80x40xf32, #tpu.memory_space<vmem>>, %arg6: memref<1x40xf32, #tpu.memory_space<vmem>>, %arg7: memref<20x40xf32, #tpu.memory_space<vmem>>, %arg8: memref<20x40xf32, #tpu.memory_space<vmem>>, %arg9: memref<1x40xf32, #tpu.memory_space<vmem>>, %arg10: memref<40x20xf32, #tpu.memory_space<vmem>>, %arg11: memref<1x20xf32, #tpu.memory_space<vmem>>, %arg12: memref<3x20x60xf32, #tpu.memory_space<vmem>>, %arg13: memref<1x60xf32, #tpu.memory_space<vmem>>, %arg14: memref<1x64x60xf32, #tpu.memory_space<vmem>>) attributes {dimension_semantics = [#tpu.dimension_semantics<parallel>], iteration_bounds = array<i64: 2>, scalar_prefetch = 0 : i64, scratch_operands = 0 : i64, tpu.core_type = #tpu.core_type<tc>, window_params = [{transform_indices = @transform_0, window_bounds = array<i64: 3, 1, 64, 20>}, {pipeline_mode = #tpu.pipeline_mode<synchronous>, transform_indices = @transform_1, window_bounds = array<i64: 20, 80>}, {pipeline_mode = #tpu.pipeline_mode<synchronous>, transform_indices = @transform_2, window_bounds = array<i64: 20, 80>}, {pipeline_mode = #tpu.pipeline_mode<synchronous>, transform_indices = @transform_3, window_bounds = array<i64: 1, 80>}, {pipeline_mode = #tpu.pipeline_mode<synchronous>, transform_indices = @transform_4, window_bounds = array<i64: 80, 40>}, {pipeline_mode = #tpu.pipeline_mode<synchronous>, transform_indices = @transform_5, window_bounds = array<i64: 1, 40>}, {pipeline_mode = #tpu.pipeline_mode<synchronous>, transform_indices = @transform_6, window_bounds = array<i64: 20, 40>}, {pipeline_mode = #tpu.pipeline_mode<synchronous>, transform_indices = @transform_7, window_bounds = array<i64: 20, 40>}, {pipeline_mode = #tpu.pipeline_mode<synchronous>, transform_indices = @transform_8, window_bounds = array<i64: 1, 40>}, {pipeline_mode = #tpu.pipeline_mode<synchronous>, transform_indices = @transform_9, window_bounds = array<i64: 40, 20>}, {pipeline_mode = #tpu.pipeline_mode<synchronous>, transform_indices = @transform_10, window_bounds = array<i64: 1, 20>}, {pipeline_mode = #tpu.pipeline_mode<synchronous>, transform_indices = @transform_11, window_bounds = array<i64: 3, 20, 60>}, {pipeline_mode = #tpu.pipeline_mode<synchronous>, transform_indices = @transform_12, window_bounds = array<i64: 1, 60>}, {transform_indices = @transform_13, window_bounds = array<i64: 1, 64, 60>}]} {
    %c1 = arith.constant 1 : index
    %c0 = arith.constant 0 : index
    %c0_0 = arith.constant 0 : index
    %c0_1 = arith.constant 0 : index
    %0 = vector.load %arg1[%c1, %c0, %c0_0, %c0_1] : memref<3x1x64x20xf32, #tpu.memory_space<vmem>>, vector<1x1x64x20xf32>
    %1 = vector.shape_cast %0 : vector<1x1x64x20xf32> to vector<64x20xf32>
    %cst = arith.constant dense<0.000000e+00> : vector<20xf32>
    %2 = vector.multi_reduction <add>, %1, %cst [0] : vector<64x20xf32> to vector<20xf32>
    %3 = vector.shape_cast %2 : vector<20xf32> to vector<1x20xf32>
    %cst_2 = arith.constant 6.400000e+01 : f32
    %4 = vector.broadcast %cst_2 : f32 to vector<1x20xf32>
    %5 = arith.divf %3, %4 : vector<1x20xf32>
    %c0_3 = arith.constant 0 : index
    %c0_4 = arith.constant 0 : index
    %c0_5 = arith.constant 0 : index
    %c0_6 = arith.constant 0 : index
    %6 = vector.load %arg1[%c0_3, %c0_4, %c0_5, %c0_6] : memref<3x1x64x20xf32, #tpu.memory_space<vmem>>, vector<1x1x64x20xf32>
    %7 = vector.shape_cast %6 : vector<1x1x64x20xf32> to vector<64x20xf32>
    %cst_7 = arith.constant dense<0.000000e+00> : vector<20xf32>
    %8 = vector.multi_reduction <add>, %7, %cst_7 [0] : vector<64x20xf32> to vector<20xf32>
    %9 = vector.shape_cast %8 : vector<20xf32> to vector<1x20xf32>
    %cst_8 = arith.constant 6.400000e+01 : f32
    %10 = vector.broadcast %cst_8 : f32 to vector<1x20xf32>
    %11 = arith.divf %9, %10 : vector<1x20xf32>
    %c2 = arith.constant 2 : index
    %c0_9 = arith.constant 0 : index
    %c0_10 = arith.constant 0 : index
    %c0_11 = arith.constant 0 : index
    %12 = vector.load %arg1[%c2, %c0_9, %c0_10, %c0_11] : memref<3x1x64x20xf32, #tpu.memory_space<vmem>>, vector<1x1x64x20xf32>
    %13 = vector.shape_cast %12 : vector<1x1x64x20xf32> to vector<64x20xf32>
    %cst_12 = arith.constant dense<0.000000e+00> : vector<20xf32>
    %14 = vector.multi_reduction <add>, %13, %cst_12 [0] : vector<64x20xf32> to vector<20xf32>
    %15 = vector.shape_cast %14 : vector<20xf32> to vector<1x20xf32>
    %cst_13 = arith.constant 6.400000e+01 : f32
    %16 = vector.broadcast %cst_13 : f32 to vector<1x20xf32>
    %17 = arith.divf %15, %16 : vector<1x20xf32>
    %18 = tpu.concatenate %11, %17 in 0 : vector<1x20xf32>, vector<1x20xf32> -> vector<2x20xf32>
    %c0_14 = arith.constant 0 : index
    %c0_15 = arith.constant 0 : index
    %19 = vector.load %arg2[%c0_14, %c0_15] : memref<20x80xf32, #tpu.memory_space<vmem>>, vector<20x80xf32>
    %cst_16 = arith.constant dense<0.000000e+00> : vector<1x80xf32>
    %20 = tpu.matmul %5, %19, %cst_16 {dimension_numbers = #tpu.dot_dimension_numbers<[1], [0], [0], [1], [0, 0, 1, 1], [], []>} : vector<1x20xf32>, vector<20x80xf32>, vector<1x80xf32> -> vector<1x80xf32>
    %c0_17 = arith.constant 0 : index
    %c0_18 = arith.constant 0 : index
    %21 = vector.load %arg3[%c0_17, %c0_18] : memref<20x80xf32, #tpu.memory_space<vmem>>, vector<20x80xf32>
    %cst_19 = arith.constant dense<0.000000e+00> : vector<2x80xf32>
    %22 = tpu.matmul %18, %21, %cst_19 {dimension_numbers = #tpu.dot_dimension_numbers<[1], [0], [0], [1], [0, 0, 1, 1], [], []>} : vector<2x20xf32>, vector<20x80xf32>, vector<2x80xf32> -> vector<2x80xf32>
    %23 = vector.broadcast %20 : vector<1x80xf32> to vector<2x80xf32>
    %24 = arith.addf %23, %22 : vector<2x80xf32>
    %c0_20 = arith.constant 0 : index
    %c0_21 = arith.constant 0 : index
    %25 = vector.load %arg4[%c0_20, %c0_21] : memref<1x80xf32, #tpu.memory_space<vmem>>, vector<1x80xf32>
    %26 = vector.broadcast %25 : vector<1x80xf32> to vector<2x80xf32>
    %27 = arith.addf %24, %26 : vector<2x80xf32>
    %cst_22 = arith.constant 0.000000e+00 : f32
    %28 = vector.broadcast %cst_22 : f32 to vector<2x80xf32>
    %29 = arith.maximumf %27, %28 : vector<2x80xf32>
    %c0_23 = arith.constant 0 : index
    %c0_24 = arith.constant 0 : index
    %30 = vector.load %arg5[%c0_23, %c0_24] : memref<80x40xf32, #tpu.memory_space<vmem>>, vector<80x40xf32>
    %cst_25 = arith.constant dense<0.000000e+00> : vector<2x40xf32>
    %31 = tpu.matmul %29, %30, %cst_25 {dimension_numbers = #tpu.dot_dimension_numbers<[1], [0], [0], [1], [0, 0, 1, 1], [], []>} : vector<2x80xf32>, vector<80x40xf32>, vector<2x40xf32> -> vector<2x40xf32>
    %c0_26 = arith.constant 0 : index
    %c0_27 = arith.constant 0 : index
    %32 = vector.load %arg6[%c0_26, %c0_27] : memref<1x40xf32, #tpu.memory_space<vmem>>, vector<1x40xf32>
    %33 = vector.broadcast %32 : vector<1x40xf32> to vector<2x40xf32>
    %34 = arith.addf %31, %33 : vector<2x40xf32>
    %35 = arith.negf %34 : vector<2x40xf32>
    %36 = math.exp %35 : vector<2x40xf32>
    %cst_28 = arith.constant 1.000000e+00 : f32
    %37 = vector.broadcast %cst_28 : f32 to vector<2x40xf32>
    %38 = arith.addf %37, %36 : vector<2x40xf32>
    %39 = arith.divf %37, %38 : vector<2x40xf32>
    %c2_29 = arith.constant 2 : index
    %c0_30 = arith.constant 0 : index
    %c0_31 = arith.constant 0 : index
    %40 = vector.load %arg12[%c2_29, %c0_30, %c0_31] : memref<3x20x60xf32, #tpu.memory_space<vmem>>, vector<1x20x60xf32>
    %41 = vector.shape_cast %40 : vector<1x20x60xf32> to vector<20x60xf32>
    %cst_32 = arith.constant dense<0.000000e+00> : vector<64x60xf32>
    %42 = tpu.matmul %1, %41, %cst_32 {dimension_numbers = #tpu.dot_dimension_numbers<[1], [0], [0], [1], [0, 0, 1, 1], [], []>} : vector<64x20xf32>, vector<20x60xf32>, vector<64x60xf32> -> vector<64x60xf32>
    %c0_33 = arith.constant 0 : index
    %c0_34 = arith.constant 0 : index
    %43 = vector.load %arg13[%c0_33, %c0_34] : memref<1x60xf32, #tpu.memory_space<vmem>>, vector<1x60xf32>
    %44 = vector.broadcast %43 : vector<1x60xf32> to vector<64x60xf32>
    %45 = arith.addf %42, %44 : vector<64x60xf32>
    %c0_35 = arith.constant 0 : index
    %c0_36 = arith.constant 0 : index
    %46 = vector.load %arg7[%c0_35, %c0_36] : memref<20x40xf32, #tpu.memory_space<vmem>>, vector<20x40xf32>
    %cst_37 = arith.constant dense<0.000000e+00> : vector<64x40xf32>
    %47 = tpu.matmul %1, %46, %cst_37 {dimension_numbers = #tpu.dot_dimension_numbers<[1], [0], [0], [1], [0, 0, 1, 1], [], []>} : vector<64x20xf32>, vector<20x40xf32>, vector<64x40xf32> -> vector<64x40xf32>
    %c0_38 = arith.constant 0 : index
    %c0_39 = arith.constant 0 : index
    %48 = vector.load %arg9[%c0_38, %c0_39] : memref<1x40xf32, #tpu.memory_space<vmem>>, vector<1x40xf32>
    %49 = vector.broadcast %48 : vector<1x40xf32> to vector<64x40xf32>
    %50 = arith.addf %47, %49 : vector<64x40xf32>
    %c0_40 = arith.constant 0 : index
    %c0_41 = arith.constant 0 : index
    %c0_42 = arith.constant 0 : index
    %c0_43 = arith.constant 0 : index
    %51 = vector.load %arg1[%c0_40, %c0_41, %c0_42, %c0_43] : memref<3x1x64x20xf32, #tpu.memory_space<vmem>>, vector<1x1x64x20xf32>
    %52 = vector.shape_cast %51 : vector<1x1x64x20xf32> to vector<64x20xf32>
    %c0_44 = arith.constant 0 : index
    %c0_45 = arith.constant 0 : index
    %53 = vector.load %arg8[%c0_44, %c0_45] : memref<20x40xf32, #tpu.memory_space<vmem>>, vector<20x40xf32>
    %cst_46 = arith.constant dense<0.000000e+00> : vector<64x40xf32>
    %54 = tpu.matmul %52, %53, %cst_46 {dimension_numbers = #tpu.dot_dimension_numbers<[1], [0], [0], [1], [0, 0, 1, 1], [], []>} : vector<64x20xf32>, vector<20x40xf32>, vector<64x40xf32> -> vector<64x40xf32>
    %55 = arith.addf %50, %54 : vector<64x40xf32>
    %56 = vector.extract_strided_slice %39 {offsets = [0, 0], sizes = [1, 40], strides = [1, 1]} : vector<2x40xf32> to vector<1x40xf32>
    %57 = vector.broadcast %56 : vector<1x40xf32> to vector<64x40xf32>
    %58 = arith.mulf %57, %55 : vector<64x40xf32>
    %c0_47 = arith.constant 0 : index
    %c0_48 = arith.constant 0 : index
    %59 = vector.load %arg10[%c0_47, %c0_48] : memref<40x20xf32, #tpu.memory_space<vmem>>, vector<40x20xf32>
    %cst_49 = arith.constant dense<0.000000e+00> : vector<64x20xf32>
    %60 = tpu.matmul %58, %59, %cst_49 {dimension_numbers = #tpu.dot_dimension_numbers<[1], [0], [0], [1], [0, 0, 1, 1], [], []>} : vector<64x40xf32>, vector<40x20xf32>, vector<64x20xf32> -> vector<64x20xf32>
    %c0_50 = arith.constant 0 : index
    %c0_51 = arith.constant 0 : index
    %61 = vector.load %arg11[%c0_50, %c0_51] : memref<1x20xf32, #tpu.memory_space<vmem>>, vector<1x20xf32>
    %62 = vector.broadcast %61 : vector<1x20xf32> to vector<64x20xf32>
    %63 = arith.addf %60, %62 : vector<64x20xf32>
    %c0_52 = arith.constant 0 : index
    %c0_53 = arith.constant 0 : index
    %c0_54 = arith.constant 0 : index
    %64 = vector.load %arg12[%c0_52, %c0_53, %c0_54] : memref<3x20x60xf32, #tpu.memory_space<vmem>>, vector<1x20x60xf32>
    %65 = vector.shape_cast %64 : vector<1x20x60xf32> to vector<20x60xf32>
    %cst_55 = arith.constant dense<0.000000e+00> : vector<64x60xf32>
    %66 = tpu.matmul %63, %65, %cst_55 {dimension_numbers = #tpu.dot_dimension_numbers<[1], [0], [0], [1], [0, 0, 1, 1], [], []>} : vector<64x20xf32>, vector<20x60xf32>, vector<64x60xf32> -> vector<64x60xf32>
    %67 = arith.addf %45, %66 : vector<64x60xf32>
    %c2_56 = arith.constant 2 : index
    %c0_57 = arith.constant 0 : index
    %c0_58 = arith.constant 0 : index
    %c0_59 = arith.constant 0 : index
    %68 = vector.load %arg1[%c2_56, %c0_57, %c0_58, %c0_59] : memref<3x1x64x20xf32, #tpu.memory_space<vmem>>, vector<1x1x64x20xf32>
    %69 = vector.shape_cast %68 : vector<1x1x64x20xf32> to vector<64x20xf32>
    %c0_60 = arith.constant 0 : index
    %c0_61 = arith.constant 0 : index
    %70 = vector.load %arg8[%c0_60, %c0_61] : memref<20x40xf32, #tpu.memory_space<vmem>>, vector<20x40xf32>
    %cst_62 = arith.constant dense<0.000000e+00> : vector<64x40xf32>
    %71 = tpu.matmul %69, %70, %cst_62 {dimension_numbers = #tpu.dot_dimension_numbers<[1], [0], [0], [1], [0, 0, 1, 1], [], []>} : vector<64x20xf32>, vector<20x40xf32>, vector<64x40xf32> -> vector<64x40xf32>
    %72 = arith.addf %50, %71 : vector<64x40xf32>
    %73 = vector.extract_strided_slice %39 {offsets = [1, 0], sizes = [1, 40], strides = [1, 1]} : vector<2x40xf32> to vector<1x40xf32>
    %74 = vector.broadcast %73 : vector<1x40xf32> to vector<64x40xf32>
    %75 = arith.mulf %74, %72 : vector<64x40xf32>
    %c0_63 = arith.constant 0 : index
    %c0_64 = arith.constant 0 : index
    %76 = vector.load %arg10[%c0_63, %c0_64] : memref<40x20xf32, #tpu.memory_space<vmem>>, vector<40x20xf32>
    %cst_65 = arith.constant dense<0.000000e+00> : vector<64x20xf32>
    %77 = tpu.matmul %75, %76, %cst_65 {dimension_numbers = #tpu.dot_dimension_numbers<[1], [0], [0], [1], [0, 0, 1, 1], [], []>} : vector<64x40xf32>, vector<40x20xf32>, vector<64x20xf32> -> vector<64x20xf32>
    %c0_66 = arith.constant 0 : index
    %c0_67 = arith.constant 0 : index
    %78 = vector.load %arg11[%c0_66, %c0_67] : memref<1x20xf32, #tpu.memory_space<vmem>>, vector<1x20xf32>
    %79 = vector.broadcast %78 : vector<1x20xf32> to vector<64x20xf32>
    %80 = arith.addf %77, %79 : vector<64x20xf32>
    %c1_68 = arith.constant 1 : index
    %c0_69 = arith.constant 0 : index
    %c0_70 = arith.constant 0 : index
    %81 = vector.load %arg12[%c1_68, %c0_69, %c0_70] : memref<3x20x60xf32, #tpu.memory_space<vmem>>, vector<1x20x60xf32>
    %82 = vector.shape_cast %81 : vector<1x20x60xf32> to vector<20x60xf32>
    %cst_71 = arith.constant dense<0.000000e+00> : vector<64x60xf32>
    %83 = tpu.matmul %80, %82, %cst_71 {dimension_numbers = #tpu.dot_dimension_numbers<[1], [0], [0], [1], [0, 0, 1, 1], [], []>} : vector<64x20xf32>, vector<20x60xf32>, vector<64x60xf32> -> vector<64x60xf32>
    %84 = arith.addf %67, %83 : vector<64x60xf32>
    %c0_72 = arith.constant 0 : index
    %c0_73 = arith.constant 0 : index
    %c0_74 = arith.constant 0 : index
    %85 = vector.load %arg14[%c0_72, %c0_73, %c0_74] : memref<1x64x60xf32, #tpu.memory_space<vmem>>, vector<1x64x60xf32>
    %86 = vector.shape_cast %85 : vector<1x64x60xf32> to vector<64x60xf32>
    %87 = vector.shape_cast %84 : vector<64x60xf32> to vector<1x64x60xf32>
    tpu.vector_store %arg14[%c0_72, %c0_73, %c0_74], %87 {strides = array<i32>} : memref<1x64x60xf32, #tpu.memory_space<vmem>>, vector<1x64x60xf32>,
    return
  }
  func.func @transform_0(%arg0: i32) -> (i32, i32, i32, i32) {
    %c0_i32 = arith.constant 0 : i32
    %c0_i32_0 = arith.constant 0 : i32
    %c0_i32_1 = arith.constant 0 : i32
    %c0_i32_2 = arith.constant 0 : i32
    return %c0_i32, %arg0, %c0_i32_0, %c0_i32_1 : i32, i32, i32, i32
  }
  func.func @transform_1(%arg0: i32) -> (i32, i32) {
    %c0_i32 = arith.constant 0 : i32
    %c0_i32_0 = arith.constant 0 : i32
    %c0_i32_1 = arith.constant 0 : i32
    return %c0_i32, %c0_i32_0 : i32, i32
  }
  func.func @transform_2(%arg0: i32) -> (i32, i32) {
    %c0_i32 = arith.constant 0 : i32
    %c0_i32_0 = arith.constant 0 : i32
    %c0_i32_1 = arith.constant 0 : i32
    return %c0_i32, %c0_i32_0 : i32, i32
  }
  func.func @transform_3(%arg0: i32) -> (i32, i32) {
    %c0_i32 = arith.constant 0 : i32
    %c0_i32_0 = arith.constant 0 : i32
    %c0_i32_1 = arith.constant 0 : i32
    return %c0_i32, %c0_i32_0 : i32, i32
  }
  func.func @transform_4(%arg0: i32) -> (i32, i32) {
    %c0_i32 = arith.constant 0 : i32
    %c0_i32_0 = arith.constant 0 : i32
    %c0_i32_1 = arith.constant 0 : i32
    return %c0_i32, %c0_i32_0 : i32, i32
  }
  func.func @transform_5(%arg0: i32) -> (i32, i32) {
    %c0_i32 = arith.constant 0 : i32
    %c0_i32_0 = arith.constant 0 : i32
    %c0_i32_1 = arith.constant 0 : i32
    return %c0_i32, %c0_i32_0 : i32, i32
  }
  func.func @transform_6(%arg0: i32) -> (i32, i32) {
    %c0_i32 = arith.constant 0 : i32
    %c0_i32_0 = arith.constant 0 : i32
    %c0_i32_1 = arith.constant 0 : i32
    return %c0_i32, %c0_i32_0 : i32, i32
  }
  func.func @transform_7(%arg0: i32) -> (i32, i32) {
    %c0_i32 = arith.constant 0 : i32
    %c0_i32_0 = arith.constant 0 : i32
    %c0_i32_1 = arith.constant 0 : i32
    return %c0_i32, %c0_i32_0 : i32, i32
  }
  func.func @transform_8(%arg0: i32) -> (i32, i32) {
    %c0_i32 = arith.constant 0 : i32
    %c0_i32_0 = arith.constant 0 : i32
    %c0_i32_1 = arith.constant 0 : i32
    return %c0_i32, %c0_i32_0 : i32, i32
  }
  func.func @transform_9(%arg0: i32) -> (i32, i32) {
    %c0_i32 = arith.constant 0 : i32
    %c0_i32_0 = arith.constant 0 : i32
    %c0_i32_1 = arith.constant 0 : i32
    return %c0_i32, %c0_i32_0 : i32, i32
  }
  func.func @transform_10(%arg0: i32) -> (i32, i32) {
    %c0_i32 = arith.constant 0 : i32
    %c0_i32_0 = arith.constant 0 : i32
    %c0_i32_1 = arith.constant 0 : i32
    return %c0_i32, %c0_i32_0 : i32, i32
  }
  func.func @transform_11(%arg0: i32) -> (i32, i32, i32) {
    %c0_i32 = arith.constant 0 : i32
    %c0_i32_0 = arith.constant 0 : i32
    %c0_i32_1 = arith.constant 0 : i32
    %c0_i32_2 = arith.constant 0 : i32
    return %c0_i32, %c0_i32_0, %c0_i32_1 : i32, i32, i32
  }
  func.func @transform_12(%arg0: i32) -> (i32, i32) {
    %c0_i32 = arith.constant 0 : i32
    %c0_i32_0 = arith.constant 0 : i32
    %c0_i32_1 = arith.constant 0 : i32
    return %c0_i32, %c0_i32_0 : i32, i32
  }
  func.func @transform_13(%arg0: i32) -> (i32, i32, i32) {
    %c0_i32 = arith.constant 0 : i32
    %c0_i32_0 = arith.constant 0 : i32
    %c0_i32_1 = arith.constant 0 : i32
    return %arg0, %c0_i32, %c0_i32_0 : i32, i32, i32
  }
}

</mosaic_0001>

<llo_original>
// kernel: tpu_custom_call.1
$region0: #{tpu_custom_call.1}
  #allocation0 [shape = 'u32[]', space=smem, size = 0x4, offset = 0x4, fixed_abs, tag = 'smem constant byte address 0x4 - core index']
  #allocation1 [shape = 'u32[144,128]{1,0:T(1,128)}', space=vmem, size = 0x12000, scoped, tag = 'internal scratch']
  %s0 = inlined_call_operand.vmem [shape: f32[3,2,64,20], index: 0, kind: input, shape index: {}]
  %s1 = inlined_call_operand.vmem [shape: f32[20,80], index: 1, kind: input, shape index: {}]
  %s2 = inlined_call_operand.vmem [shape: f32[20,80], index: 2, kind: input, shape index: {}]
  %s3 = inlined_call_operand.vmem [shape: f32[1,80], index: 3, kind: input, shape index: {}]
  %s4 = inlined_call_operand.vmem [shape: f32[80,40], index: 4, kind: input, shape index: {}]
  %s5 = inlined_call_operand.vmem [shape: f32[1,40], index: 5, kind: input, shape index: {}]
  %s6 = inlined_call_operand.vmem [shape: f32[20,40], index: 6, kind: input, shape index: {}]
  %s7 = inlined_call_operand.vmem [shape: f32[20,40], index: 7, kind: input, shape index: {}]
  %s8 = inlined_call_operand.vmem [shape: f32[1,40], index: 8, kind: input, shape index: {}]
  %s9 = inlined_call_operand.vmem [shape: f32[40,20], index: 9, kind: input, shape index: {}]
  %s10 = inlined_call_operand.vmem [shape: f32[1,20], index: 10, kind: input, shape index: {}]
  %s11 = inlined_call_operand.vmem [shape: f32[3,20,60], index: 11, kind: input, shape index: {}]
  %s12 = inlined_call_operand.vmem [shape: f32[1,60], index: 12, kind: input, shape index: {}]
  %s13 = inlined_call_operand.vmem [shape: f32[2,64,60], index: 13, kind: output, shape index: {}]
  %s14 = sld [smem:[#allocation0]]
  $region123: #{tpu_custom_call.1} parent=0
    _
  %s16 = ssub.s32 1, %s14
  %s17 = scalar_select 0, %s16, %s14
  $region1: #{tpu_custom_call.1} parent=0
    #allocation2 [shape = 'u8[196608]{0}', space=vmem, size = 0x30000, scoped, tag = 'input window, operand 0']
    loop: start=0, step=1, limit=4
    $region2: #{tpu_custom_call.1} parent=1 // loop_pre_header
      _
    $region3: #{tpu_custom_call.1} parent=1 // loop_header
      %s19 = sphi 0, %s23
      %p20 = scmp.ge.s32.totalorder %s19, 4
      %s29 = sphi 0, %s31
      %s32 = sphi 0, %s29
      %s33 = sphi 0, %s32
      %s49 = sphi 0, %s33
      %s53 = sphi 0, %s53
      %s55 = sphi 0, %s53
      %s56 = sphi 0, %s55
      %s70 = sphi 0, %s56
      %s74 = sphi 0, %s74
      %s76 = sphi 0, %s74
      %s77 = sphi 0, %s76
      %s91 = sphi 0, %s77
      %s95 = sphi 0, %s95
      %s97 = sphi 0, %s95
      %s98 = sphi 0, %s97
      %s112 = sphi 0, %s98
      %s116 = sphi 0, %s116
      %s118 = sphi 0, %s116
      %s119 = sphi 0, %s118
      %s133 = sphi 0, %s119
      %s137 = sphi 0, %s137
      %s139 = sphi 0, %s137
      %s140 = sphi 0, %s139
      %s154 = sphi 0, %s140
      %s158 = sphi 0, %s158
      %s160 = sphi 0, %s158
      %s161 = sphi 0, %s160
      %s175 = sphi 0, %s161
      %s179 = sphi 0, %s179
      %s181 = sphi 0, %s179
      %s182 = sphi 0, %s181
      %s196 = sphi 0, %s182
      %s200 = sphi 0, %s200
      %s202 = sphi 0, %s200
      %s203 = sphi 0, %s202
      %s217 = sphi 0, %s203
      %s221 = sphi 0, %s221
      %s223 = sphi 0, %s221
      %s224 = sphi 0, %s223
      %s238 = sphi 0, %s224
      %s242 = sphi 0, %s242
      %s244 = sphi 0, %s242
      %s245 = sphi 0, %s244
      %s259 = sphi 0, %s245
      %s263 = sphi 0, %s263
      %s265 = sphi 0, %s263
      %s266 = sphi 0, %s265
      %s280 = sphi 0, %s266
      %s284 = sphi 0, %s284
      %s286 = sphi 0, %s284
      %s287 = sphi 0, %s286
      %s301 = sphi 0, %s287
      %s307 = sphi 0, %s309
      %s310 = sphi 0, %s307
      %s311 = sphi 0, %s310
      %s327 = sphi 0, %s311
    $region4: #{tpu_custom_call.1} parent=1 // loop_header_branch
      %22 = sbr.rel (%p20) target = $region8
    $region5: #{tpu_custom_call.1} parent=1 // loop_body
      %s24 = ssub.s32 %s19, 1
      %s25 = ssub.s32 %s19, 2
      %s26 = sadd.s32 %s19, 1
      %s27 = ssub.s32 %s19, %s26
      %p28 = scmp.eq.s32.totalorder %s27, 0
      %s30 = sadd.s32 %s29, 1
      %s31 = scalar_select %p28, %s29, %s30
      %p34 = pneg %p28
      %p35 = scmp.eq.s32.totalorder %s19, 1
      %p36 = por %p34, %p35
      %p37 = scmp.ne.s32.totalorder %s29, %s32
      %p38 = scmp.eq.s32.totalorder %s19, 0
      %p39 = por %p37, %p38
      %p40 = scmp.ne.s32.totalorder %s29, %s32
      %p41 = scmp.eq.s32.totalorder %s24, 1
      %p42 = por %p40, %p41
      %p43 = scmp.ne.s32.totalorder %s32, %s33
      %p44 = scmp.eq.s32.totalorder %s24, 0
      %p45 = por %p43, %p44
      %p46 = scmp.ne.s32.totalorder %s32, %s33
      %p47 = scmp.eq.s32.totalorder %s25, 1
      %p48 = por %p46, %p47
      %p50 = scmp.ne.s32.totalorder %s33, %s49
      %p51 = scmp.eq.s32.totalorder %s25, 0
      %p52 = por %p50, %p51
      %s54 = sadd.s32 %s53, 1
      %p57 = scmp.eq.s32.totalorder %s19, 1
      %p58 = scmp.ne.s32.totalorder %s53, %s55
      %p59 = scmp.eq.s32.totalorder %s19, 0
      %p60 = por %p58, %p59
      %p61 = scmp.ne.s32.totalorder %s53, %s55
      %p62 = scmp.eq.s32.totalorder %s24, 1
      %p63 = por %p61, %p62
      %p64 = scmp.ne.s32.totalorder %s55, %s56
      %p65 = scmp.eq.s32.totalorder %s24, 0
      %p66 = por %p64, %p65
      %p67 = scmp.ne.s32.totalorder %s55, %s56
      %p68 = scmp.eq.s32.totalorder %s25, 1
      %p69 = por %p67, %p68
      %p71 = scmp.ne.s32.totalorder %s56, %s70
      %p72 = scmp.eq.s32.totalorder %s25, 0
      %p73 = por %p71, %p72
      %s75 = sadd.s32 %s74, 1
      %p78 = scmp.eq.s32.totalorder %s19, 1
      %p79 = scmp.ne.s32.totalorder %s74, %s76
      %p80 = scmp.eq.s32.totalorder %s19, 0
      %p81 = por %p79, %p80
      %p82 = scmp.ne.s32.totalorder %s74, %s76
      %p83 = scmp.eq.s32.totalorder %s24, 1
      %p84 = por %p82, %p83
      %p85 = scmp.ne.s32.totalorder %s76, %s77
      %p86 = scmp.eq.s32.totalorder %s24, 0
      %p87 = por %p85, %p86
      %p88 = scmp.ne.s32.totalorder %s76, %s77
      %p89 = scmp.eq.s32.totalorder %s25, 1
      %p90 = por %p88, %p89
      %p92 = scmp.ne.s32.totalorder %s77, %s91
      %p93 = scmp.eq.s32.totalorder %s25, 0
      %p94 = por %p92, %p93
      %s96 = sadd.s32 %s95, 1
      %p99 = scmp.eq.s32.totalorder %s19, 1
      %p100 = scmp.ne.s32.totalorder %s95, %s97
      %p101 = scmp.eq.s32.totalorder %s19, 0
      %p102 = por %p100, %p101
      %p103 = scmp.ne.s32.totalorder %s95, %s97
      %p104 = scmp.eq.s32.totalorder %s24, 1
      %p105 = por %p103, %p104
      %p106 = scmp.ne.s32.totalorder %s97, %s98
      %p107 = scmp.eq.s32.totalorder %s24, 0
      %p108 = por %p106, %p107
      %p109 = scmp.ne.s32.totalorder %s97, %s98
      %p110 = scmp.eq.s32.totalorder %s25, 1
      %p111 = por %p109, %p110
      %p113 = scmp.ne.s32.totalorder %s98, %s112
      %p114 = scmp.eq.s32.totalorder %s25, 0
      %p115 = por %p113, %p114
      %s117 = sadd.s32 %s116, 1
      %p120 = scmp.eq.s32.totalorder %s19, 1
      %p121 = scmp.ne.s32.totalorder %s116, %s118
      %p122 = scmp.eq.s32.totalorder %s19, 0
      %p123 = por %p121, %p122
      %p124 = scmp.ne.s32.totalorder %s116, %s118
      %p125 = scmp.eq.s32.totalorder %s24, 1
      %p126 = por %p124, %p125
      %p127 = scmp.ne.s32.totalorder %s118, %s119
      %p128 = scmp.eq.s32.totalorder %s24, 0
      %p129 = por %p127, %p128
      %p130 = scmp.ne.s32.totalorder %s118, %s119
      %p131 = scmp.eq.s32.totalorder %s25, 1
      %p132 = por %p130, %p131
      %p134 = scmp.ne.s32.totalorder %s119, %s133
      %p135 = scmp.eq.s32.totalorder %s25, 0
      %p136 = por %p134, %p135
      %s138 = sadd.s32 %s137, 1
      %p141 = scmp.eq.s32.totalorder %s19, 1
      %p142 = scmp.ne.s32.totalorder %s137, %s139
      %p143 = scmp.eq.s32.totalorder %s19, 0
      %p144 = por %p142, %p143
      %p145 = scmp.ne.s32.totalorder %s137, %s139
      %p146 = scmp.eq.s32.totalorder %s24, 1
      %p147 = por %p145, %p146
      %p148 = scmp.ne.s32.totalorder %s139, %s140
      %p149 = scmp.eq.s32.totalorder %s24, 0
      %p150 = por %p148, %p149
      %p151 = scmp.ne.s32.totalorder %s139, %s140
      %p152 = scmp.eq.s32.totalorder %s25, 1
      %p153 = por %p151, %p152
      %p155 = scmp.ne.s32.totalorder %s140, %s154
      %p156 = scmp.eq.s32.totalorder %s25, 0
      %p157 = por %p155, %p156
      %s159 = sadd.s32 %s158, 1
      %p162 = scmp.eq.s32.totalorder %s19, 1
      %p163 = scmp.ne.s32.totalorder %s158, %s160
      %p164 = scmp.eq.s32.totalorder %s19, 0
      %p165 = por %p163, %p164
      %p166 = scmp.ne.s32.totalorder %s158, %s160
      %p167 = scmp.eq.s32.totalorder %s24, 1
      %p168 = por %p166, %p167
      %p169 = scmp.ne.s32.totalorder %s160, %s161
      %p170 = scmp.eq.s32.totalorder %s24, 0
      %p171 = por %p169, %p170
      %p172 = scmp.ne.s32.totalorder %s160, %s161
      %p173 = scmp.eq.s32.totalorder %s25, 1
      %p174 = por %p172, %p173
      %p176 = scmp.ne.s32.totalorder %s161, %s175
      %p177 = scmp.eq.s32.totalorder %s25, 0
      %p178 = por %p176, %p177
      %s180 = sadd.s32 %s179, 1
      %p183 = scmp.eq.s32.totalorder %s19, 1
      %p184 = scmp.ne.s32.totalorder %s179, %s181
      %p185 = scmp.eq.s32.totalorder %s19, 0
      %p186 = por %p184, %p185
      %p187 = scmp.ne.s32.totalorder %s179, %s181
      %p188 = scmp.eq.s32.totalorder %s24, 1
      %p189 = por %p187, %p188
      %p190 = scmp.ne.s32.totalorder %s181, %s182
      %p191 = scmp.eq.s32.totalorder %s24, 0
      %p192 = por %p190, %p191
      %p193 = scmp.ne.s32.totalorder %s181, %s182
      %p194 = scmp.eq.s32.totalorder %s25, 1
      %p195 = por %p193, %p194
      %p197 = scmp.ne.s32.totalorder %s182, %s196
      %p198 = scmp.eq.s32.totalorder %s25, 0
      %p199 = por %p197, %p198
      %s201 = sadd.s32 %s200, 1
      %p204 = scmp.eq.s32.totalorder %s19, 1
      %p205 = scmp.ne.s32.totalorder %s200, %s202
      %p206 = scmp.eq.s32.totalorder %s19, 0
      %p207 = por %p205, %p206
      %p208 = scmp.ne.s32.totalorder %s200, %s202
      %p209 = scmp.eq.s32.totalorder %s24, 1
      %p210 = por %p208, %p209
      %p211 = scmp.ne.s32.totalorder %s202, %s203
      %p212 = scmp.eq.s32.totalorder %s24, 0
      %p213 = por %p211, %p212
      %p214 = scmp.ne.s32.totalorder %s202, %s203
      %p215 = scmp.eq.s32.totalorder %s25, 1
      %p216 = por %p214, %p215
      %p218 = scmp.ne.s32.totalorder %s203, %s217
      %p219 = scmp.eq.s32.totalorder %s25, 0
      %p220 = por %p218, %p219
      %s222 = sadd.s32 %s221, 1
      %p225 = scmp.eq.s32.totalorder %s19, 1
      %p226 = scmp.ne.s32.totalorder %s221, %s223
      %p227 = scmp.eq.s32.totalorder %s19, 0
      %p228 = por %p226, %p227
      %p229 = scmp.ne.s32.totalorder %s221, %s223
      %p230 = scmp.eq.s32.totalorder %s24, 1
      %p231 = por %p229, %p230
      %p232 = scmp.ne.s32.totalorder %s223, %s224
      %p233 = scmp.eq.s32.totalorder %s24, 0
      %p234 = por %p232, %p233
      %p235 = scmp.ne.s32.totalorder %s223, %s224
      %p236 = scmp.eq.s32.totalorder %s25, 1
      %p237 = por %p235, %p236
      %p239 = scmp.ne.s32.totalorder %s224, %s238
      %p240 = scmp.eq.s32.totalorder %s25, 0
      %p241 = por %p239, %p240
      %s243 = sadd.s32 %s242, 1
      %p246 = scmp.eq.s32.totalorder %s19, 1
      %p247 = scmp.ne.s32.totalorder %s242, %s244
      %p248 = scmp.eq.s32.totalorder %s19, 0
      %p249 = por %p247, %p248
      %p250 = scmp.ne.s32.totalorder %s242, %s244
      %p251 = scmp.eq.s32.totalorder %s24, 1
      %p252 = por %p250, %p251
      %p253 = scmp.ne.s32.totalorder %s244, %s245
      %p254 = scmp.eq.s32.totalorder %s24, 0
      %p255 = por %p253, %p254
      %p256 = scmp.ne.s32.totalorder %s244, %s245
      %p257 = scmp.eq.s32.totalorder %s25, 1
      %p258 = por %p256, %p257
      %p260 = scmp.ne.s32.totalorder %s245, %s259
      %p261 = scmp.eq.s32.totalorder %s25, 0
      %p262 = por %p260, %p261
      %s264 = sadd.s32 %s263, 1
      %p267 = scmp.eq.s32.totalorder %s19, 1
      %p268 = scmp.ne.s32.totalorder %s263, %s265
      %p269 = scmp.eq.s32.totalorder %s19, 0
      %p270 = por %p268, %p269
      %p271 = scmp.ne.s32.totalorder %s263, %s265
      %p272 = scmp.eq.s32.totalorder %s24, 1
      %p273 = por %p271, %p272
      %p274 = scmp.ne.s32.totalorder %s265, %s266
      %p275 = scmp.eq.s32.totalorder %s24, 0
      %p276 = por %p274, %p275
      %p277 = scmp.ne.s32.totalorder %s265, %s266
      %p278 = scmp.eq.s32.totalorder %s25, 1
      %p279 = por %p277, %p278
      %p281 = scmp.ne.s32.totalorder %s266, %s280
      %p282 = scmp.eq.s32.totalorder %s25, 0
      %p283 = por %p281, %p282
      %s285 = sadd.s32 %s284, 1
      %p288 = scmp.eq.s32.totalorder %s19, 1
      %p289 = scmp.ne.s32.totalorder %s284, %s286
      %p290 = scmp.eq.s32.totalorder %s19, 0
      %p291 = por %p289, %p290
      %p292 = scmp.ne.s32.totalorder %s284, %s286
      %p293 = scmp.eq.s32.totalorder %s24, 1
      %p294 = por %p292, %p293
      %p295 = scmp.ne.s32.totalorder %s286, %s287
      %p296 = scmp.eq.s32.totalorder %s24, 0
      %p297 = por %p295, %p296
      %p298 = scmp.ne.s32.totalorder %s286, %s287
      %p299 = scmp.eq.s32.totalorder %s25, 1
      %p300 = por %p298, %p299
      %p302 = scmp.ne.s32.totalorder %s287, %s301
      %p303 = scmp.eq.s32.totalorder %s25, 0
      %p304 = por %p302, %p303
      %s305 = ssub.s32 %s19, %s26
      %p306 = scmp.eq.s32.totalorder %s305, 0
      %s308 = sadd.s32 %s307, 1
      %s309 = scalar_select %p306, %s307, %s308
      %p312 = pneg %p306
      %p313 = scmp.eq.s32.totalorder %s19, 1
      %p314 = por %p312, %p313
      %p315 = scmp.ne.s32.totalorder %s307, %s310
      %p316 = scmp.eq.s32.totalorder %s19, 0
      %p317 = por %p315, %p316
      %p318 = scmp.ne.s32.totalorder %s307, %s310
      %p319 = scmp.eq.s32.totalorder %s24, 1
      %p320 = por %p318, %p319
      %p321 = scmp.ne.s32.totalorder %s310, %s311
      %p322 = scmp.eq.s32.totalorder %s24, 0
      %p323 = por %p321, %p322
      %p324 = scmp.ne.s32.totalorder %s310, %s311
      %p325 = scmp.eq.s32.totalorder %s25, 1
      %p326 = por %p324, %p325
      %p328 = scmp.ne.s32.totalorder %s311, %s327
      %p329 = scmp.eq.s32.totalorder %s25, 0
      %p330 = por %p328, %p329
      %p331 = scmp.le.s32.totalorder 1, %s19
      %p332 = scmp.lt.s32.totalorder %s19, 3
      %p333 = pnand %p331, %p332
      %p334 = pneg %p333
      // Predicated region
      $region9: #{tpu_custom_call.1} parent=5 // pred_check
        _
      $region10: #{tpu_custom_call.1} parent=5 // pred_check_branch
        %336 = sbr.rel (%p333) target = $region12
      $region11: #{tpu_custom_call.1} parent=5 // pred_region
        %s337 = ssub.s32 %s19, 1
        // Predicated region
        $region13: #{tpu_custom_call.1} parent=11 // pred_check
          %p338 = pneg %p66
        $region14: #{tpu_custom_call.1} parent=11 // pred_check_branch
          %340 = sbr.rel (%p338) target = $region16
        $region15: #{tpu_custom_call.1} parent=11 // pred_region
          _
        $region16: #{tpu_custom_call.1} parent=11 // pred_fallthru
          _
        // Predicated region
        $region17: #{tpu_custom_call.1} parent=11 // pred_check
          %p341 = pneg %p87
        $region18: #{tpu_custom_call.1} parent=11 // pred_check_branch
          %343 = sbr.rel (%p341) target = $region20
        $region19: #{tpu_custom_call.1} parent=11 // pred_region
          _
        $region20: #{tpu_custom_call.1} parent=11 // pred_fallthru
          _
        // Predicated region
        $region21: #{tpu_custom_call.1} parent=11 // pred_check
          %p344 = pneg %p108
        $region22: #{tpu_custom_call.1} parent=11 // pred_check_branch
          %346 = sbr.rel (%p344) target = $region24
        $region23: #{tpu_custom_call.1} parent=11 // pred_region
          _
        $region24: #{tpu_custom_call.1} parent=11 // pred_fallthru
          _
        // Predicated region
        $region25: #{tpu_custom_call.1} parent=11 // pred_check
          %p347 = pneg %p129
        $region26: #{tpu_custom_call.1} parent=11 // pred_check_branch
          %349 = sbr.rel (%p347) target = $region28
        $region27: #{tpu_custom_call.1} parent=11 // pred_region
          _
        $region28: #{tpu_custom_call.1} parent=11 // pred_fallthru
          _
        // Predicated region
        $region29: #{tpu_custom_call.1} parent=11 // pred_check
          %p350 = pneg %p150
        $region30: #{tpu_custom_call.1} parent=11 // pred_check_branch
          %352 = sbr.rel (%p350) target = $region32
        $region31: #{tpu_custom_call.1} parent=11 // pred_region
          _
        $region32: #{tpu_custom_call.1} parent=11 // pred_fallthru
          _
        // Predicated region
        $region33: #{tpu_custom_call.1} parent=11 // pred_check
          %p353 = pneg %p171
        $region34: #{tpu_custom_call.1} parent=11 // pred_check_branch
          %355 = sbr.rel (%p353) target = $region36
        $region35: #{tpu_custom_call.1} parent=11 // pred_region
          _
        $region36: #{tpu_custom_call.1} parent=11 // pred_fallthru
          _
        // Predicated region
        $region37: #{tpu_custom_call.1} parent=11 // pred_check
          %p356 = pneg %p192
        $region38: #{tpu_custom_call.1} parent=11 // pred_check_branch
          %358 = sbr.rel (%p356) target = $region40
        $region39: #{tpu_custom_call.1} parent=11 // pred_region
          _
        $region40: #{tpu_custom_call.1} parent=11 // pred_fallthru
          _
        // Predicated region
        $region41: #{tpu_custom_call.1} parent=11 // pred_check
          %p359 = pneg %p213
        $region42: #{tpu_custom_call.1} parent=11 // pred_check_branch
          %361 = sbr.rel (%p359) target = $region44
        $region43: #{tpu_custom_call.1} parent=11 // pred_region
          _
        $region44: #{tpu_custom_call.1} parent=11 // pred_fallthru
          _
        // Predicated region
        $region45: #{tpu_custom_call.1} parent=11 // pred_check
          %p362 = pneg %p234
        $region46: #{tpu_custom_call.1} parent=11 // pred_check_branch
          %364 = sbr.rel (%p362) target = $region48
        $region47: #{tpu_custom_call.1} parent=11 // pred_region
          _
        $region48: #{tpu_custom_call.1} parent=11 // pred_fallthru
          _
        // Predicated region
        $region49: #{tpu_custom_call.1} parent=11 // pred_check
          %p365 = pneg %p255
        $region50: #{tpu_custom_call.1} parent=11 // pred_check_branch
          %367 = sbr.rel (%p365) target = $region52
        $region51: #{tpu_custom_call.1} parent=11 // pred_region
          _
        $region52: #{tpu_custom_call.1} parent=11 // pred_fallthru
          _
        // Predicated region
        $region53: #{tpu_custom_call.1} parent=11 // pred_check
          %p368 = pneg %p276
        $region54: #{tpu_custom_call.1} parent=11 // pred_check_branch
          %370 = sbr.rel (%p368) target = $region56
        $region55: #{tpu_custom_call.1} parent=11 // pred_region
          _
        $region56: #{tpu_custom_call.1} parent=11 // pred_fallthru
          _
        // Predicated region
        $region57: #{tpu_custom_call.1} parent=11 // pred_check
          %p371 = pneg %p297
        $region58: #{tpu_custom_call.1} parent=11 // pred_check_branch
          %373 = sbr.rel (%p371) target = $region60
        $region59: #{tpu_custom_call.1} parent=11 // pred_region
          _
        $region60: #{tpu_custom_call.1} parent=11 // pred_fallthru
          _
      $region12: #{tpu_custom_call.1} parent=5 // pred_fallthru
        _
      %p374 = scmp.lt.s32.totalorder %s19, 2
      // Predicated region
      $region61: #{tpu_custom_call.1} parent=5 // pred_check
        %p375 = pneg %p374
      $region62: #{tpu_custom_call.1} parent=5 // pred_check_branch
        %377 = sbr.rel (%p375) target = $region64
      $region63: #{tpu_custom_call.1} parent=5 // pred_region
        // Predicated region
        $region65: #{tpu_custom_call.1} parent=63 // pred_check
          %p378 = pneg %p39
        $region66: #{tpu_custom_call.1} parent=63 // pred_check_branch
          %380 = sbr.rel (%p378) target = $region68
        $region67: #{tpu_custom_call.1} parent=63 // pred_region
          %s381 = sand.u32 %s29, 1
          %s382 = sand.u32 %s29, 1
          %s383 = smul.addr %s382, 192
          %s384 = scalar_lea.vmem [#allocation2], %s383
          %s385 = smul.addr %s19, 8
          %s386 = smul.addr %s385, 8
          %s387 = scalar_lea.vmem %s0, %s386
          // Predicated region
          $region69: #{tpu_custom_call.1} parent=67 // pred_check
            _
          $region70: #{tpu_custom_call.1} parent=67 // pred_check_branch
            %389 = sbr.rel (0) target = $region72
          $region71: #{tpu_custom_call.1} parent=67 // pred_region
            // Predicated region
            $region73: #{tpu_custom_call.1} parent=71 // pred_check
              _
            $region74: #{tpu_custom_call.1} parent=71 // pred_check_branch
              %391 = sbr.rel (0) target = $region76
            $region75: #{tpu_custom_call.1} parent=71 // pred_region
              // Predicated region
              $region88: #{tpu_custom_call.1} parent=75 // pred_check
                _
              $region89: #{tpu_custom_call.1} parent=75 // pred_check_branch
                %453 = sbr.rel (0) target = $region91
              $region90: #{tpu_custom_call.1} parent=75 // pred_region
                loop: start=0, step=1, limit=1
                $region92: #{tpu_custom_call.1} parent=90 // loop_pre_header
                  _
                $region93: #{tpu_custom_call.1} parent=90 // loop_header
                  %s455 = sphi 0, %s459
                  %p456 = scmp.ge.s32.totalorder %s455, 1
                  %s460 = sphi %s387, %s387
                  %s461 = sphi %s384, %s384
                $region94: #{tpu_custom_call.1} parent=90 // loop_header_branch
                  %458 = sbr.rel (%p456) target = $region98
                $region95: #{tpu_custom_call.1} parent=90 // loop_body
                  %v462 = vld [vmem:[%s460] sm:$0xff]
                  %463 = vst [vmem:[%s461] sm:$0xff] %v462
                  %v464 = vld [vmem:[%s460 + $0x8] sm:$0xff]
                  %465 = vst [vmem:[%s461 + $0x8] sm:$0xff] %v464
                  %v466 = vld [vmem:[%s460 + $0x10] sm:$0xff]
                  %467 = vst [vmem:[%s461 + $0x10] sm:$0xff] %v466
                  %v468 = vld [vmem:[%s460 + $0x18] sm:$0xff]
                  %469 = vst [vmem:[%s461 + $0x18] sm:$0xff] %v468
                  %v470 = vld [vmem:[%s460 + $0x20] sm:$0xff]
                  %471 = vst [vmem:[%s461 + $0x20] sm:$0xff] %v470
                  %v472 = vld [vmem:[%s460 + $0x28] sm:$0xff]
                  %473 = vst [vmem:[%s461 + $0x28] sm:$0xff] %v472
                  %v474 = vld [vmem:[%s460 + $0x30] sm:$0xff]
                  %475 = vst [vmem:[%s461 + $0x30] sm:$0xff] %v474
                  %v476 = vld [vmem:[%s460 + $0x38] sm:$0xff]
                  %477 = vst [vmem:[%s461 + $0x38] sm:$0xff] %v476
                  %v478 = vld [vmem:[%s460 + $0x80] sm:$0xff]
                  %479 = vst [vmem:[%s461 + $0x40] sm:$0xff] %v478
                  %v480 = vld [vmem:[%s460 + $0x88] sm:$0xff]
                  %481 = vst [vmem:[%s461 + $0x48] sm:$0xff] %v480
                  %v482 = vld [vmem:[%s460 + $0x90] sm:$0xff]
                  %483 = vst [vmem:[%s461 + $0x50] sm:$0xff] %v482
                  %v484 = vld [vmem:[%s460 + $0x98] sm:$0xff]
                  %485 = vst [vmem:[%s461 + $0x58] sm:$0xff] %v484
                  %v486 = vld [vmem:[%s460 + $0xa0] sm:$0xff]
                  %487 = vst [vmem:[%s461 + $0x60] sm:$0xff] %v486
                  %v488 = vld [vmem:[%s460 + $0xa8] sm:$0xff]
                  %489 = vst [vmem:[%s461 + $0x68] sm:$0xff] %v488
                  %v490 = vld [vmem:[%s460 + $0xb0] sm:$0xff]
                  %491 = vst [vmem:[%s461 + $0x70] sm:$0xff] %v490
                  %v492 = vld [vmem:[%s460 + $0xb8] sm:$0xff]
                  %493 = vst [vmem:[%s461 + $0x78] sm:$0xff] %v492
                  %v494 = vld [vmem:[%s460 + $0x100] sm:$0xff]
                  %495 = vst [vmem:[%s461 + $0x80] sm:$0xff] %v494
                  %v496 = vld [vmem:[%s460 + $0x108] sm:$0xff]
                  %497 = vst [vmem:[%s461 + $0x88] sm:$0xff] %v496
                  %v498 = vld [vmem:[%s460 + $0x110] sm:$0xff]
                  %499 = vst [vmem:[%s461 + $0x90] sm:$0xff] %v498
                  %v500 = vld [vmem:[%s460 + $0x118] sm:$0xff]
                  %501 = vst [vmem:[%s461 + $0x98] sm:$0xff] %v500
                  %v502 = vld [vmem:[%s460 + $0x120] sm:$0xff]
                  %503 = vst [vmem:[%s461 + $0xa0] sm:$0xff] %v502
                  %v504 = vld [vmem:[%s460 + $0x128] sm:$0xff]
                  %505 = vst [vmem:[%s461 + $0xa8] sm:$0xff] %v504
                  %v506 = vld [vmem:[%s460 + $0x130] sm:$0xff]
                  %507 = vst [vmem:[%s461 + $0xb0] sm:$0xff] %v506
                  %v508 = vld [vmem:[%s460 + $0x138] sm:$0xff]
                  %509 = vst [vmem:[%s461 + $0xb8] sm:$0xff] %v508
                $region96: #{tpu_custom_call.1} parent=90 // loop_footer
                  %s459 = sadd.s32 1, %s455
                $region97: #{tpu_custom_call.1} parent=90 // loop_footer_branch
                  %454 = sbr.rel target = $region93
                $region98: #{tpu_custom_call.1} parent=90 // loop_exit
                  _
              $region91: #{tpu_custom_call.1} parent=75 // pred_fallthru
                _
              // Predicated region
              $region99: #{tpu_custom_call.1} parent=75 // pred_check
                _
              $region100: #{tpu_custom_call.1} parent=75 // pred_check_branch
                %511 = sbr.rel target = $region102
              $region101: #{tpu_custom_call.1} parent=75 // pred_region
                _
              $region102: #{tpu_custom_call.1} parent=75 // pred_fallthru
                _
            $region76: #{tpu_custom_call.1} parent=71 // pred_fallthru
              _
            // Predicated region
            $region77: #{tpu_custom_call.1} parent=71 // pred_check
              _
            $region78: #{tpu_custom_call.1} parent=71 // pred_check_branch
              %393 = sbr.rel target = $region80
            $region79: #{tpu_custom_call.1} parent=71 // pred_region
              %s395 = ssub.s32 256, 1
              loop: start=0, step=1, limit=1
              $region81: #{tpu_custom_call.1} parent=79 // loop_pre_header
                _
              $region82: #{tpu_custom_call.1} parent=79 // loop_header
                %s397 = sphi 0, %s401
                %p398 = scmp.ge.s32.totalorder %s397, 1
                %s402 = sphi %s387, %s387
                %s403 = sphi %s384, %s384
              $region83: #{tpu_custom_call.1} parent=79 // loop_header_branch
                %400 = sbr.rel (%p398) target = $region87
              $region84: #{tpu_custom_call.1} parent=79 // loop_body
                %v404 = vld [vmem:[%s402] sm:%s395]
                %405 = vst [vmem:[%s403] sm:%s395] %v404
                %v406 = vld [vmem:[%s402 + $0x8] sm:%s395]
                %407 = vst [vmem:[%s403 + $0x8] sm:%s395] %v406
                %v408 = vld [vmem:[%s402 + $0x10] sm:%s395]
                %409 = vst [vmem:[%s403 + $0x10] sm:%s395] %v408
                %v410 = vld [vmem:[%s402 + $0x18] sm:%s395]
                %411 = vst [vmem:[%s403 + $0x18] sm:%s395] %v410
                %v412 = vld [vmem:[%s402 + $0x20] sm:%s395]
                %413 = vst [vmem:[%s403 + $0x20] sm:%s395] %v412
                %v414 = vld [vmem:[%s402 + $0x28] sm:%s395]
                %415 = vst [vmem:[%s403 + $0x28] sm:%s395] %v414
                %v416 = vld [vmem:[%s402 + $0x30] sm:%s395]
                %417 = vst [vmem:[%s403 + $0x30] sm:%s395] %v416
                %v418 = vld [vmem:[%s402 + $0x38] sm:%s395]
                %419 = vst [vmem:[%s403 + $0x38] sm:%s395] %v418
                %v420 = vld [vmem:[%s402 + $0x80] sm:%s395]
                %421 = vst [vmem:[%s403 + $0x40] sm:%s395] %v420
                %v422 = vld [vmem:[%s402 + $0x88] sm:%s395]
                %423 = vst [vmem:[%s403 + $0x48] sm:%s395] %v422
                %v424 = vld [vmem:[%s402 + $0x90] sm:%s395]
                %425 = vst [vmem:[%s403 + $0x50] sm:%s395] %v424
                %v426 = vld [vmem:[%s402 + $0x98] sm:%s395]
                %427 = vst [vmem:[%s403 + $0x58] sm:%s395] %v426
                %v428 = vld [vmem:[%s402 + $0xa0] sm:%s395]
                %429 = vst [vmem:[%s403 + $0x60] sm:%s395] %v428
                %v430 = vld [vmem:[%s402 + $0xa8] sm:%s395]
                %431 = vst [vmem:[%s403 + $0x68] sm:%s395] %v430
                %v432 = vld [vmem:[%s402 + $0xb0] sm:%s395]
                %433 = vst [vmem:[%s403 + $0x70] sm:%s395] %v432
                %v434 = vld [vmem:[%s402 + $0xb8] sm:%s395]
                %435 = vst [vmem:[%s403 + $0x78] sm:%s395] %v434
                %v436 = vld [vmem:[%s402 + $0x100] sm:%s395]
                %437 = vst [vmem:[%s403 + $0x80] sm:%s395] %v436
                %v438 = vld [vmem:[%s402 + $0x108] sm:%s395]
                %439 = vst [vmem:[%s403 + $0x88] sm:%s395] %v438
                %v440 = vld [vmem:[%s402 + $0x110] sm:%s395]
                %441 = vst [vmem:[%s403 + $0x90] sm:%s395] %v440
                %v442 = vld [vmem:[%s402 + $0x118] sm:%s395]
                %443 = vst [vmem:[%s403 + $0x98] sm:%s395] %v442
                %v444 = vld [vmem:[%s402 + $0x120] sm:%s395]
                %445 = vst [vmem:[%s403 + $0xa0] sm:%s395] %v444
                %v446 = vld [vmem:[%s402 + $0x128] sm:%s395]
                %447 = vst [vmem:[%s403 + $0xa8] sm:%s395] %v446
                %v448 = vld [vmem:[%s402 + $0x130] sm:%s395]
                %449 = vst [vmem:[%s403 + $0xb0] sm:%s395] %v448
                %v450 = vld [vmem:[%s402 + $0x138] sm:%s395]
                %451 = vst [vmem:[%s403 + $0xb8] sm:%s395] %v450
              $region85: #{tpu_custom_call.1} parent=79 // loop_footer
                %s401 = sadd.s32 1, %s397
              $region86: #{tpu_custom_call.1} parent=79 // loop_footer_branch
                %396 = sbr.rel target = $region82
              $region87: #{tpu_custom_call.1} parent=79 // loop_exit
                _
            $region80: #{tpu_custom_call.1} parent=71 // pred_fallthru
              _
          $region72: #{tpu_custom_call.1} parent=67 // pred_fallthru
            _
          %512 = vnop
        $region68: #{tpu_custom_call.1} parent=63 // pred_fallthru
          _
      $region64: #{tpu_custom_call.1} parent=5 // pred_fallthru
        _
      %p513 = scmp.le.s32.totalorder 1, %s19
      %p514 = scmp.lt.s32.totalorder %s19, 3
      %p515 = pnand %p513, %p514
      %p516 = pneg %p515
      // Predicated region
      $region103: #{tpu_custom_call.1} parent=5 // pred_check
        _
      $region104: #{tpu_custom_call.1} parent=5 // pred_check_branch
        %518 = sbr.rel (%p515) target = $region106
      $region105: #{tpu_custom_call.1} parent=5 // pred_region
        %s519 = ssub.s32 %s19, 1
        %s520 = sand.u32 %s32, 1
        %s521 = sand.u32 %s32, 1
        %s522 = smul.addr %s521, 192
        %s523 = scalar_lea.vmem [#allocation2], %s522
        // Predicated region
        $region107: #{tpu_custom_call.1} parent=105 // pred_check
          %p524 = pneg %p45
        $region108: #{tpu_custom_call.1} parent=105 // pred_check_branch
          %526 = sbr.rel (%p524) target = $region110
        $region109: #{tpu_custom_call.1} parent=105 // pred_region
          _
        $region110: #{tpu_custom_call.1} parent=105 // pred_fallthru
          _
        %s527 = sand.u32 %s32, 1
        %s528 = sand.u32 %s32, 1
        %s529 = smul.addr %s528, 192
        %s530 = scalar_lea.vmem [#allocation2], %s529
        %p531 = pneg %p45
        %p532 = pneg %p42
        %p533 = pneg %p66
        %p534 = pneg %p63
        %p535 = pneg %p87
        %p536 = pneg %p84
        %p537 = pneg %p108
        %p538 = pneg %p105
        %p539 = pneg %p129
        %p540 = pneg %p126
        %p541 = pneg %p150
        %p542 = pneg %p147
        %p543 = pneg %p171
        %p544 = pneg %p168
        %p545 = pneg %p192
        %p546 = pneg %p189
        %p547 = pneg %p213
        %p548 = pneg %p210
        %p549 = pneg %p234
        %p550 = pneg %p231
        %p551 = pneg %p255
        %p552 = pneg %p252
        %p553 = pneg %p276
        %p554 = pneg %p273
        %p555 = pneg %p297
        %p556 = pneg %p294
        %p557 = pneg %p323
        %p558 = pneg %p320
        %p559 = scmp.lt.s32.totalorder %s24, 1
        %s560 = scalar_select %p559, %s24, 1
        %s561 = smul.addr %s560, 8
        %s562 = smul.addr %s561, 8
        %s563 = scalar_lea.vmem %s13, %s562
        %p564 = scmp.lt.s32.totalorder %s24, 1
        %s565 = scalar_select %p564, %s24, 1
        %s566 = smul.addr %s565, 8
        %s567 = smul.addr %s566, 8
        %s568 = scalar_lea.vmem %s13, %s567
        %s569 = scalar_lea.vmem %s523, 64 [#allocation2]
        %v570 = vld [vmem:[%s569] sm:$0xff]
        %v571 = vld [vmem:[%s569 + $0x8] sm:$0xff]
        %v572 = vld [vmem:[%s569 + $0x10] sm:$0xff]
        %v573 = vld [vmem:[%s569 + $0x18] sm:$0xff]
        %v574 = vld [vmem:[%s569 + $0x20] sm:$0xff]
        %v575 = vld [vmem:[%s569 + $0x28] sm:$0xff]
        %v576 = vld [vmem:[%s569 + $0x30] sm:$0xff]
        %v577 = vld [vmem:[%s569 + $0x38] sm:$0xff]
        %vm578 = vcmask 162816
        %v579 = vsel %vm578, %v570, 0.0
        %v580 = vsel %vm578, %v571, 0.0
        %v581 = vadd.f32 %v579, %v580
        %v582 = vsel %vm578, %v572, 0.0
        %v583 = vadd.f32 %v581, %v582
        %v584 = vsel %vm578, %v573, 0.0
        %v585 = vadd.f32 %v583, %v584
        %v586 = vsel %vm578, %v574, 0.0
        %v587 = vadd.f32 %v585, %v586
        %v588 = vsel %vm578, %v575, 0.0
        %v589 = vadd.f32 %v587, %v588
        %v590 = vsel %vm578, %v576, 0.0
        %v591 = vadd.f32 %v589, %v590
        %v592 = vsel %vm578, %v577, 0.0
        %v593 = vadd.f32 %v591, %v592
        %v594 = vrot.slane %v593, 4
        %v595 = vadd.f32 %v593, %v594
        %v596 = vrot.slane %v595, 2
        %v597 = vadd.f32 %v595, %v596
        %v598 = vrot.slane %v597, 1
        %v599 = vadd.f32 %v597, %v598
        %v600 = vrcp.pop 64.0
        %v601 = vmul.f32 %v599, %v600
        %v602 = vld [vmem:[%s523] sm:$0xff]
        %v603 = vld [vmem:[%s523 + $0x8] sm:$0xff]
        %v604 = vld [vmem:[%s523 + $0x10] sm:$0xff]
        %v605 = vld [vmem:[%s523 + $0x18] sm:$0xff]
        %v606 = vld [vmem:[%s523 + $0x20] sm:$0xff]
        %v607 = vld [vmem:[%s523 + $0x28] sm:$0xff]
        %v608 = vld [vmem:[%s523 + $0x30] sm:$0xff]
        %v609 = vld [vmem:[%s523 + $0x38] sm:$0xff]
        %v610 = vsel %vm578, %v602, 0.0
        %v611 = vsel %vm578, %v603, 0.0
        %v612 = vadd.f32 %v610, %v611
        %v613 = vsel %vm578, %v604, 0.0
        %v614 = vadd.f32 %v612, %v613
        %v615 = vsel %vm578, %v605, 0.0
        %v616 = vadd.f32 %v614, %v615
        %v617 = vsel %vm578, %v606, 0.0
        %v618 = vadd.f32 %v616, %v617
        %v619 = vsel %vm578, %v607, 0.0
        %v620 = vadd.f32 %v618, %v619
        %v621 = vsel %vm578, %v608, 0.0
        %v622 = vadd.f32 %v620, %v621
        %v623 = vsel %vm578, %v609, 0.0
        %v624 = vadd.f32 %v622, %v623
        %v625 = vrot.slane %v624, 4
        %v626 = vadd.f32 %v624, %v625
        %v627 = vrot.slane %v626, 2
        %v628 = vadd.f32 %v626, %v627
        %v629 = vrot.slane %v628, 1
        %v630 = vadd.f32 %v628, %v629
        %v631 = vmul.f32 %v630, %v600
        %s632 = scalar_lea.vmem %s523, 128 [#allocation2]
        %v633 = vld [vmem:[%s632] sm:$0xff]
        %v634 = vld [vmem:[%s632 + $0x8] sm:$0xff]
        %v635 = vld [vmem:[%s632 + $0x10] sm:$0xff]
        %v636 = vld [vmem:[%s632 + $0x18] sm:$0xff]
        %v637 = vld [vmem:[%s632 + $0x20] sm:$0xff]
        %v638 = vld [vmem:[%s632 + $0x28] sm:$0xff]
        %v639 = vld [vmem:[%s632 + $0x30] sm:$0xff]
        %v640 = vld [vmem:[%s632 + $0x38] sm:$0xff]
        %v641 = vsel %vm578, %v633, 0.0
        %v642 = vsel %vm578, %v634, 0.0
        %v643 = vadd.f32 %v641, %v642
        %v644 = vsel %vm578, %v635, 0.0
        %v645 = vadd.f32 %v643, %v644
        %v646 = vsel %vm578, %v636, 0.0
        %v647 = vadd.f32 %v645, %v646
        %v648 = vsel %vm578, %v637, 0.0
        %v649 = vadd.f32 %v647, %v648
        %v650 = vsel %vm578, %v638, 0.0
        %v651 = vadd.f32 %v649, %v650
        %v652 = vsel %vm578, %v639, 0.0
        %v653 = vadd.f32 %v651, %v652
        %v654 = vsel %vm578, %v640, 0.0
        %v655 = vadd.f32 %v653, %v654
        %v656 = vrot.slane %v655, 4
        %v657 = vadd.f32 %v655, %v656
        %v658 = vrot.slane %v657, 2
        %v659 = vadd.f32 %v657, %v658
        %v660 = vrot.slane %v659, 1
        %v661 = vadd.f32 %v659, %v660
        %v662 = vmul.f32 %v661, %v600
        %vm663 = vcmask 1040384
        %v664 = vsel %vm663, %v631, %v662
        %v665 = vld [vmem:[%s1] sm:$0xff]
        %v666 = vld [vmem:[%s1 + $0x8] sm:$0xff]
        %v667 = vld [vmem:[%s1 + $0x10] sm:$0xf]
        %v669 = vsel %vm578, %v601, 0
        %vm671 = vcmask 1043456
        %v673 = vsel %vm671, %v667, 0
        %675 = vmatprep.subr.mxu0 0.0
        %676 = vmatpush1.msra.mxu0 0.0
        %677 = vmatprep.subr.mxu0 0.0
        %678 = vmatpush1.msra.mxu0 0.0
        %679 = vmatprep.subr.mxu0 0.0
        %680 = vmatpush1.msra.mxu0 0.0
        %681 = vmatprep.subr.mxu0 0.0
        %682 = vmatpush1.msra.mxu0 0.0
        %683 = vmatprep.subr.mxu0 0.0
        %684 = vmatpush1.msra.mxu0 0.0
        %685 = vmatprep.subr.mxu0 0.0
        %686 = vmatpush1.msra.mxu0 0.0
        %687 = vmatprep.subr.mxu0 0.0
        %688 = vmatpush1.msra.mxu0 0.0
        %689 = vmatprep.subr.mxu0 0.0
        %690 = vmatpush1.msra.mxu0 0.0
        %691 = vmatprep.subr.mxu0 0.0
        %692 = vmatpush1.msra.mxu0 0.0
        %693 = vmatprep.subr.mxu0 0.0
        %694 = vmatpush1.msra.mxu0 0.0
        %695 = vmatprep.subr.mxu0 0.0
        %696 = vmatpush1.msra.mxu0 0.0
        %697 = vmatprep.subr.mxu0 0.0
        %698 = vmatpush1.msra.mxu0 0.0
        %699 = vmatprep.subr.mxu0 0.0
        %700 = vmatpush1.msra.mxu0 0.0
        %701 = vmatprep.subr.mxu0 0.0
        %702 = vmatpush1.msra.mxu0 %v673
        %703 = vmatprep.subr.mxu0 0.0
        %704 = vmatpush1.msra.mxu0 %v666
        %705 = vmatprep.subr.mxu0 0.0
        %706 = vmatpush1.msra.mxu0 %v665
        %707 = vmatprep.subr.mxu0 0.0
        %708 = vmatpush2.msra.mxu0 0.0
        %709 = vmatprep.subr.mxu0 0.0
        %710 = vmatpush2.msra.mxu0 0.0
        %711 = vmatprep.subr.mxu0 0.0
        %712 = vmatpush2.msra.mxu0 0.0
        %713 = vmatprep.subr.mxu0 0.0
        %714 = vmatpush2.msra.mxu0 0.0
        %715 = vmatprep.subr.mxu0 0.0
        %716 = vmatpush2.msra.mxu0 0.0
        %717 = vmatprep.subr.mxu0 0.0
        %718 = vmatpush2.msra.mxu0 0.0
        %719 = vmatprep.subr.mxu0 0.0
        %720 = vmatpush2.msra.mxu0 0.0
        %721 = vmatprep.subr.mxu0 0.0
        %722 = vmatpush2.msra.mxu0 0.0
        %723 = vmatprep.subr.mxu0 0.0
        %724 = vmatpush2.msra.mxu0 0.0
        %725 = vmatprep.subr.mxu0 0.0
        %726 = vmatpush2.msra.mxu0 0.0
        %727 = vmatprep.subr.mxu0 0.0
        %728 = vmatpush2.msra.mxu0 0.0
        %729 = vmatprep.subr.mxu0 0.0
        %730 = vmatpush2.msra.mxu0 0.0
        %731 = vmatprep.subr.mxu0 0.0
        %732 = vmatpush2.msra.mxu0 0.0
        %733 = vmatprep.subr.mxu0 0.0
        %734 = vmatpush2.msra.mxu0 0.0
        %735 = vmatprep.subr.mxu0 0.0
        %736 = vmatpush2.msra.mxu0 0.0
        %737 = vmatprep.subr.mxu0 0.0
        %738 = vmatpush2.msra.mxu0 0.0
        %739 = vmatprep.mubr.f32.mxu0 0.0
        %740 = vmatmul.mubr.f32.gmra.mxu0 %v669
        %v741 = vpop.f32.mrf.mxu0
        %v742 = vadd.f32 0.0, %v741
        %v743 = vpop.f32.mrf.mxu0
        %744 = vdwg.mxu0
        %v745 = vld [vmem:[%s2] sm:$0xff]
        %v746 = vld [vmem:[%s2 + $0x8] sm:$0xff]
        %v747 = vld [vmem:[%s2 + $0x10] sm:$0xf]
        %v749 = vsel %vm578, %v664, 0
        %v752 = vsel %vm671, %v747, 0
        %754 = vmatprep.subr.mxu0 0.0
        %755 = vmatpush1.msra.mxu0 0.0
        %756 = vmatprep.subr.mxu0 0.0
        %757 = vmatpush1.msra.mxu0 0.0
        %758 = vmatprep.subr.mxu0 0.0
        %759 = vmatpush1.msra.mxu0 0.0
        %760 = vmatprep.subr.mxu0 0.0
        %761 = vmatpush1.msra.mxu0 0.0
        %762 = vmatprep.subr.mxu0 0.0
        %763 = vmatpush1.msra.mxu0 0.0
        %764 = vmatprep.subr.mxu0 0.0
        %765 = vmatpush1.msra.mxu0 0.0
        %766 = vmatprep.subr.mxu0 0.0
        %767 = vmatpush1.msra.mxu0 0.0
        %768 = vmatprep.subr.mxu0 0.0
        %769 = vmatpush1.msra.mxu0 0.0
        %770 = vmatprep.subr.mxu0 0.0
        %771 = vmatpush1.msra.mxu0 0.0
        %772 = vmatprep.subr.mxu0 0.0
        %773 = vmatpush1.msra.mxu0 0.0
        %774 = vmatprep.subr.mxu0 0.0
        %775 = vmatpush1.msra.mxu0 0.0
        %776 = vmatprep.subr.mxu0 0.0
        %777 = vmatpush1.msra.mxu0 0.0
        %778 = vmatprep.subr.mxu0 0.0
        %779 = vmatpush1.msra.mxu0 0.0
        %780 = vmatprep.subr.mxu0 0.0
        %781 = vmatpush1.msra.mxu0 %v752
        %782 = vmatprep.subr.mxu0 0.0
        %783 = vmatpush1.msra.mxu0 %v746
        %784 = vmatprep.subr.mxu0 0.0
        %785 = vmatpush1.msra.mxu0 %v745
        %786 = vmatprep.subr.mxu0 0.0
        %787 = vmatpush2.msra.mxu0 0.0
        %788 = vmatprep.subr.mxu0 0.0
        %789 = vmatpush2.msra.mxu0 0.0
        %790 = vmatprep.subr.mxu0 0.0
        %791 = vmatpush2.msra.mxu0 0.0
        %792 = vmatprep.subr.mxu0 0.0
        %793 = vmatpush2.msra.mxu0 0.0
        %794 = vmatprep.subr.mxu0 0.0
        %795 = vmatpush2.msra.mxu0 0.0
        %796 = vmatprep.subr.mxu0 0.0
        %797 = vmatpush2.msra.mxu0 0.0
        %798 = vmatprep.subr.mxu0 0.0
        %799 = vmatpush2.msra.mxu0 0.0
        %800 = vmatprep.subr.mxu0 0.0
        %801 = vmatpush2.msra.mxu0 0.0
        %802 = vmatprep.subr.mxu0 0.0
        %803 = vmatpush2.msra.mxu0 0.0
        %804 = vmatprep.subr.mxu0 0.0
        %805 = vmatpush2.msra.mxu0 0.0
        %806 = vmatprep.subr.mxu0 0.0
        %807 = vmatpush2.msra.mxu0 0.0
        %808 = vmatprep.subr.mxu0 0.0
        %809 = vmatpush2.msra.mxu0 0.0
        %810 = vmatprep.subr.mxu0 0.0
        %811 = vmatpush2.msra.mxu0 0.0
        %812 = vmatprep.subr.mxu0 0.0
        %813 = vmatpush2.msra.mxu0 0.0
        %814 = vmatprep.subr.mxu0 0.0
        %815 = vmatpush2.msra.mxu0 0.0
        %816 = vmatprep.subr.mxu0 0.0
        %817 = vmatpush2.msra.mxu0 0.0
        %818 = vmatprep.mubr.f32.mxu0 0.0
        %819 = vmatmul.mubr.f32.gmra.mxu0 %v749
        %v820 = vpop.f32.mrf.mxu0
        %v821 = vadd.f32 0.0, %v820
        %v822 = vpop.f32.mrf.mxu0
        %823 = vdwg.mxu0
        %v824 = vlaneseq
        %v825 = vshrl.u32 %v824, 7
        %v826 = vsub.s32 0, %v825
        %v827 = vrot.slane %v742, %v826
        %v828 = vadd.f32 %v827, %v821
        %v829 = vld [vmem:[%s3] sm:$0x1]
        %v831 = vlaneseq
        %v832 = vshrl.u32 %v831, 7
        %v833 = vsub.s32 0, %v832
        %v834 = vrot.slane %v829, %v833
        %v836 = vadd.f32 %v828, %v834
        %v837 = vmax.f32 %v836, 0.0
        %v838 = vld [vmem:[%s4] sm:$0xff]
        %v839 = vld [vmem:[%s4 + $0x8] sm:$0xff]
        %v840 = vld [vmem:[%s4 + $0x10] sm:$0xff]
        %v841 = vld [vmem:[%s4 + $0x18] sm:$0xff]
        %v842 = vld [vmem:[%s4 + $0x20] sm:$0xff]
        %v843 = vld [vmem:[%s4 + $0x28] sm:$0xff]
        %v844 = vld [vmem:[%s4 + $0x30] sm:$0xff]
        %v845 = vld [vmem:[%s4 + $0x38] sm:$0xff]
        %v846 = vld [vmem:[%s4 + $0x40] sm:$0xff]
        %v847 = vld [vmem:[%s4 + $0x48] sm:$0xff]
        %v848 = vld [vmem:[%s5] sm:$0x1]
        %v850 = vlaneseq
        %v851 = vshrl.u32 %v850, 7
        %v852 = vsub.s32 0, %v851
        %v853 = vrot.slane %v848, %v852
        %vm855 = vcmask 654336
        %v857 = vsel %vm855, %v837, 0
        %859 = vmatprep.subr.mxu0 0.0
        %860 = vmatpush1.msra.mxu0 0.0
        %861 = vmatprep.subr.mxu0 0.0
        %862 = vmatpush1.msra.mxu0 0.0
        %863 = vmatprep.subr.mxu0 0.0
        %864 = vmatpush1.msra.mxu0 0.0
        %865 = vmatprep.subr.mxu0 0.0
        %866 = vmatpush1.msra.mxu0 0.0
        %867 = vmatprep.subr.mxu0 0.0
        %868 = vmatpush1.msra.mxu0 0.0
        %869 = vmatprep.subr.mxu0 0.0
        %870 = vmatpush1.msra.mxu0 0.0
        %871 = vmatprep.subr.mxu0 0.0
        %872 = vmatpush1.msra.mxu0 %v847
        %873 = vmatprep.subr.mxu0 0.0
        %874 = vmatpush1.msra.mxu0 %v846
        %875 = vmatprep.subr.mxu0 0.0
        %876 = vmatpush1.msra.mxu0 %v845
        %877 = vmatprep.subr.mxu0 0.0
        %878 = vmatpush1.msra.mxu0 %v844
        %879 = vmatprep.subr.mxu0 0.0
        %880 = vmatpush1.msra.mxu0 %v843
        %881 = vmatprep.subr.mxu0 0.0
        %882 = vmatpush1.msra.mxu0 %v842
        %883 = vmatprep.subr.mxu0 0.0
        %884 = vmatpush1.msra.mxu0 %v841
        %885 = vmatprep.subr.mxu0 0.0
        %886 = vmatpush1.msra.mxu0 %v840
        %887 = vmatprep.subr.mxu0 0.0
        %888 = vmatpush1.msra.mxu0 %v839
        %889 = vmatprep.subr.mxu0 0.0
        %890 = vmatpush1.msra.mxu0 %v838
        %891 = vmatprep.subr.mxu0 0.0
        %892 = vmatpush2.msra.mxu0 0.0
        %893 = vmatprep.subr.mxu0 0.0
        %894 = vmatpush2.msra.mxu0 0.0
        %895 = vmatprep.subr.mxu0 0.0
        %896 = vmatpush2.msra.mxu0 0.0
        %897 = vmatprep.subr.mxu0 0.0
        %898 = vmatpush2.msra.mxu0 0.0
        %899 = vmatprep.subr.mxu0 0.0
        %900 = vmatpush2.msra.mxu0 0.0
        %901 = vmatprep.subr.mxu0 0.0
        %902 = vmatpush2.msra.mxu0 0.0
        %903 = vmatprep.subr.mxu0 0.0
        %904 = vmatpush2.msra.mxu0 0.0
        %905 = vmatprep.subr.mxu0 0.0
        %906 = vmatpush2.msra.mxu0 0.0
        %907 = vmatprep.subr.mxu0 0.0
        %908 = vmatpush2.msra.mxu0 0.0
        %909 = vmatprep.subr.mxu0 0.0
        %910 = vmatpush2.msra.mxu0 0.0
        %911 = vmatprep.subr.mxu0 0.0
        %912 = vmatpush2.msra.mxu0 0.0
        %913 = vmatprep.subr.mxu0 0.0
        %914 = vmatpush2.msra.mxu0 0.0
        %915 = vmatprep.subr.mxu0 0.0
        %916 = vmatpush2.msra.mxu0 0.0
        %917 = vmatprep.subr.mxu0 0.0
        %918 = vmatpush2.msra.mxu0 0.0
        %919 = vmatprep.subr.mxu0 0.0
        %920 = vmatpush2.msra.mxu0 0.0
        %921 = vmatprep.subr.mxu0 0.0
        %922 = vmatpush2.msra.mxu0 0.0
        %923 = vmatprep.mubr.f32.mxu0 0.0
        %924 = vmatmul.mubr.f32.gmra.mxu0 %v857
        %v925 = vpop.f32.mrf.mxu0
        %v926 = vadd.f32 %v853, %v925
        %v927 = vpop.f32.mrf.mxu0
        %928 = vdwg.mxu0
        %v929 = vxor.u32 %v926, 2147483648
        %v930 = vmul.f32 %v929, 1.442695
        %v931 = vpow.pop %v930
        %v932 = vadd.f32 %v931, 1.0
        %v933 = vrcp.pop %v932
        %v934 = vmul.f32 1.0, %v933
        %s935 = scalar_lea.vmem %s11, 48
        %v936 = vld [vmem:[%s935] sm:$0xff]
        %v937 = vld [vmem:[%s935 + $0x8] sm:$0xff]
        %v938 = vld [vmem:[%s935 + $0x10] sm:$0xf]
        %v939 = vld [vmem:[%s12] sm:$0x1]
        %v941 = vlaneseq
        %v942 = vshrl.u32 %v941, 7
        %v943 = vsub.s32 0, %v942
        %v944 = vrot.slane %v939, %v943
        %v947 = vsel %vm578, %v570, 0
        %v950 = vsel %vm578, %v571, 0
        %v953 = vsel %vm578, %v572, 0
        %v956 = vsel %vm578, %v573, 0
        %v959 = vsel %vm578, %v574, 0
        %v962 = vsel %vm578, %v575, 0
        %v965 = vsel %vm578, %v576, 0
        %v968 = vsel %vm578, %v577, 0
        %v971 = vsel %vm671, %v938, 0
        %973 = vmatprep.subr.mxu0 0.0
        %974 = vmatpush1.msra.mxu0 0.0
        %975 = vmatprep.subr.mxu0 0.0
        %976 = vmatpush1.msra.mxu0 0.0
        %977 = vmatprep.subr.mxu0 0.0
        %978 = vmatpush1.msra.mxu0 0.0
        %979 = vmatprep.subr.mxu0 0.0
        %980 = vmatpush1.msra.mxu0 0.0
        %981 = vmatprep.subr.mxu0 0.0
        %982 = vmatpush1.msra.mxu0 0.0
        %983 = vmatprep.subr.mxu0 0.0
        %984 = vmatpush1.msra.mxu0 0.0
        %985 = vmatprep.subr.mxu0 0.0
        %986 = vmatpush1.msra.mxu0 0.0
        %987 = vmatprep.subr.mxu0 0.0
        %988 = vmatpush1.msra.mxu0 0.0
        %989 = vmatprep.subr.mxu0 0.0
        %990 = vmatpush1.msra.mxu0 0.0
        %991 = vmatprep.subr.mxu0 0.0
        %992 = vmatpush1.msra.mxu0 0.0
        %993 = vmatprep.subr.mxu0 0.0
        %994 = vmatpush1.msra.mxu0 0.0
        %995 = vmatprep.subr.mxu0 0.0
        %996 = vmatpush1.msra.mxu0 0.0
        %997 = vmatprep.subr.mxu0 0.0
        %998 = vmatpush1.msra.mxu0 0.0
        %999 = vmatprep.subr.mxu0 0.0
        %1000 = vmatpush1.msra.mxu0 %v971
        %1001 = vmatprep.subr.mxu0 0.0
        %1002 = vmatpush1.msra.mxu0 %v937
        %1003 = vmatprep.subr.mxu0 0.0
        %1004 = vmatpush1.msra.mxu0 %v936
        %1005 = vmatprep.subr.mxu0 0.0
        %1006 = vmatpush2.msra.mxu0 0.0
        %1007 = vmatprep.subr.mxu0 0.0
        %1008 = vmatpush2.msra.mxu0 0.0
        %1009 = vmatprep.subr.mxu0 0.0
        %1010 = vmatpush2.msra.mxu0 0.0
        %1011 = vmatprep.subr.mxu0 0.0
        %1012 = vmatpush2.msra.mxu0 0.0
        %1013 = vmatprep.subr.mxu0 0.0
        %1014 = vmatpush2.msra.mxu0 0.0
        %1015 = vmatprep.subr.mxu0 0.0
        %1016 = vmatpush2.msra.mxu0 0.0
        %1017 = vmatprep.subr.mxu0 0.0
        %1018 = vmatpush2.msra.mxu0 0.0
        %1019 = vmatprep.subr.mxu0 0.0
        %1020 = vmatpush2.msra.mxu0 0.0
        %1021 = vmatprep.subr.mxu0 0.0
        %1022 = vmatpush2.msra.mxu0 0.0
        %1023 = vmatprep.subr.mxu0 0.0
        %1024 = vmatpush2.msra.mxu0 0.0
        %1025 = vmatprep.subr.mxu0 0.0
        %1026 = vmatpush2.msra.mxu0 0.0
        %1027 = vmatprep.subr.mxu0 0.0
        %1028 = vmatpush2.msra.mxu0 0.0
        %1029 = vmatprep.subr.mxu0 0.0
        %1030 = vmatpush2.msra.mxu0 0.0
        %1031 = vmatprep.subr.mxu0 0.0
        %1032 = vmatpush2.msra.mxu0 0.0
        %1033 = vmatprep.subr.mxu0 0.0
        %1034 = vmatpush2.msra.mxu0 0.0
        %1035 = vmatprep.subr.mxu0 0.0
        %1036 = vmatpush2.msra.mxu0 0.0
        %1037 = vmatprep.mubr.f32.mxu0 0.0
        %1038 = vmatmul.mubr.f32.gmra.mxu0 %v947
        %v1039 = vpop.f32.mrf.mxu0
        %v1040 = vadd.f32 %v944, %v1039
        %v1041 = vpop.f32.mrf.mxu0
        %1042 = vmatprep.mubr.f32.mxu0 0.0
        %1043 = vmatmul.mubr.f32.gmra.mxu0 %v950
        %v1044 = vpop.f32.mrf.mxu0
        %v1045 = vadd.f32 %v944, %v1044
        %v1046 = vpop.f32.mrf.mxu0
        %1047 = vmatprep.mubr.f32.mxu0 0.0
        %1048 = vmatmul.mubr.f32.gmra.mxu0 %v953
        %v1049 = vpop.f32.mrf.mxu0
        %v1050 = vadd.f32 %v944, %v1049
        %v1051 = vpop.f32.mrf.mxu0
        %1052 = vmatprep.mubr.f32.mxu0 0.0
        %1053 = vmatmul.mubr.f32.gmra.mxu0 %v956
        %v1054 = vpop.f32.mrf.mxu0
        %v1055 = vadd.f32 %v944, %v1054
        %v1056 = vpop.f32.mrf.mxu0
        %1057 = vmatprep.mubr.f32.mxu0 0.0
        %1058 = vmatmul.mubr.f32.gmra.mxu0 %v959
        %v1059 = vpop.f32.mrf.mxu0
        %v1060 = vadd.f32 %v944, %v1059
        %v1061 = vpop.f32.mrf.mxu0
        %1062 = vmatprep.mubr.f32.mxu0 0.0
        %1063 = vmatmul.mubr.f32.gmra.mxu0 %v962
        %v1064 = vpop.f32.mrf.mxu0
        %v1065 = vadd.f32 %v944, %v1064
        %v1066 = vpop.f32.mrf.mxu0
        %1067 = vmatprep.mubr.f32.mxu0 0.0
        %1068 = vmatmul.mubr.f32.gmra.mxu0 %v965
        %v1069 = vpop.f32.mrf.mxu0
        %v1070 = vadd.f32 %v944, %v1069
        %v1071 = vpop.f32.mrf.mxu0
        %1072 = vmatprep.mubr.f32.mxu0 0.0
        %1073 = vmatmul.mubr.f32.gmra.mxu0 %v968
        %v1074 = vpop.f32.mrf.mxu0
        %v1075 = vadd.f32 %v944, %v1074
        %v1076 = vpop.f32.mrf.mxu0
        %1077 = vdwg.mxu0
        %v1078 = vld [vmem:[%s6] sm:$0xff]
        %v1079 = vld [vmem:[%s6 + $0x8] sm:$0xff]
        %v1080 = vld [vmem:[%s6 + $0x10] sm:$0xf]
        %v1081 = vld [vmem:[%s8] sm:$0x1]
        %v1083 = vlaneseq
        %v1084 = vshrl.u32 %v1083, 7
        %v1085 = vsub.s32 0, %v1084
        %v1086 = vrot.slane %v1081, %v1085
        %v1089 = vsel %vm671, %v1080, 0
        %1091 = vmatprep.subr.mxu0 0.0
        %1092 = vmatpush1.msra.mxu0 0.0
        %1093 = vmatprep.subr.mxu0 0.0
        %1094 = vmatpush1.msra.mxu0 0.0
        %1095 = vmatprep.subr.mxu0 0.0
        %1096 = vmatpush1.msra.mxu0 0.0
        %1097 = vmatprep.subr.mxu0 0.0
        %1098 = vmatpush1.msra.mxu0 0.0
        %1099 = vmatprep.subr.mxu0 0.0
        %1100 = vmatpush1.msra.mxu0 0.0
        %1101 = vmatprep.subr.mxu0 0.0
        %1102 = vmatpush1.msra.mxu0 0.0
        %1103 = vmatprep.subr.mxu0 0.0
        %1104 = vmatpush1.msra.mxu0 0.0
        %1105 = vmatprep.subr.mxu0 0.0
        %1106 = vmatpush1.msra.mxu0 0.0
        %1107 = vmatprep.subr.mxu0 0.0
        %1108 = vmatpush1.msra.mxu0 0.0
        %1109 = vmatprep.subr.mxu0 0.0
        %1110 = vmatpush1.msra.mxu0 0.0
        %1111 = vmatprep.subr.mxu0 0.0
        %1112 = vmatpush1.msra.mxu0 0.0
        %1113 = vmatprep.subr.mxu0 0.0
        %1114 = vmatpush1.msra.mxu0 0.0
        %1115 = vmatprep.subr.mxu0 0.0
        %1116 = vmatpush1.msra.mxu0 0.0
        %1117 = vmatprep.subr.mxu0 0.0
        %1118 = vmatpush1.msra.mxu0 %v1089
        %1119 = vmatprep.subr.mxu0 0.0
        %1120 = vmatpush1.msra.mxu0 %v1079
        %1121 = vmatprep.subr.mxu0 0.0
        %1122 = vmatpush1.msra.mxu0 %v1078
        %1123 = vmatprep.subr.mxu0 0.0
        %1124 = vmatpush2.msra.mxu0 0.0
        %1125 = vmatprep.subr.mxu0 0.0
        %1126 = vmatpush2.msra.mxu0 0.0
        %1127 = vmatprep.subr.mxu0 0.0
        %1128 = vmatpush2.msra.mxu0 0.0
        %1129 = vmatprep.subr.mxu0 0.0
        %1130 = vmatpush2.msra.mxu0 0.0
        %1131 = vmatprep.subr.mxu0 0.0
        %1132 = vmatpush2.msra.mxu0 0.0
        %1133 = vmatprep.subr.mxu0 0.0
        %1134 = vmatpush2.msra.mxu0 0.0
        %1135 = vmatprep.subr.mxu0 0.0
        %1136 = vmatpush2.msra.mxu0 0.0
        %1137 = vmatprep.subr.mxu0 0.0
        %1138 = vmatpush2.msra.mxu0 0.0
        %1139 = vmatprep.subr.mxu0 0.0
        %1140 = vmatpush2.msra.mxu0 0.0
        %1141 = vmatprep.subr.mxu0 0.0
        %1142 = vmatpush2.msra.mxu0 0.0
        %1143 = vmatprep.subr.mxu0 0.0
        %1144 = vmatpush2.msra.mxu0 0.0
        %1145 = vmatprep.subr.mxu0 0.0
        %1146 = vmatpush2.msra.mxu0 0.0
        %1147 = vmatprep.subr.mxu0 0.0
        %1148 = vmatpush2.msra.mxu0 0.0
        %1149 = vmatprep.subr.mxu0 0.0
        %1150 = vmatpush2.msra.mxu0 0.0
        %1151 = vmatprep.subr.mxu0 0.0
        %1152 = vmatpush2.msra.mxu0 0.0
        %1153 = vmatprep.subr.mxu0 0.0
        %1154 = vmatpush2.msra.mxu0 0.0
        %1155 = vmatprep.mubr.f32.mxu0 0.0
        %1156 = vmatmul.mubr.f32.gmra.mxu0 %v947
        %v1157 = vpop.f32.mrf.mxu0
        %v1158 = vadd.f32 %v1086, %v1157
        %v1159 = vpop.f32.mrf.mxu0
        %1160 = vmatprep.mubr.f32.mxu0 0.0
        %1161 = vmatmul.mubr.f32.gmra.mxu0 %v950
        %v1162 = vpop.f32.mrf.mxu0
        %v1163 = vadd.f32 %v1086, %v1162
        %v1164 = vpop.f32.mrf.mxu0
        %1165 = vmatprep.mubr.f32.mxu0 0.0
        %1166 = vmatmul.mubr.f32.gmra.mxu0 %v953
        %v1167 = vpop.f32.mrf.mxu0
        %v1168 = vadd.f32 %v1086, %v1167
        %v1169 = vpop.f32.mrf.mxu0
        %1170 = vmatprep.mubr.f32.mxu0 0.0
        %1171 = vmatmul.mubr.f32.gmra.mxu0 %v956
        %v1172 = vpop.f32.mrf.mxu0
        %v1173 = vadd.f32 %v1086, %v1172
        %v1174 = vpop.f32.mrf.mxu0
        %1175 = vmatprep.mubr.f32.mxu0 0.0
        %1176 = vmatmul.mubr.f32.gmra.mxu0 %v959
        %v1177 = vpop.f32.mrf.mxu0
        %v1178 = vadd.f32 %v1086, %v1177
        %v1179 = vpop.f32.mrf.mxu0
        %1180 = vmatprep.mubr.f32.mxu0 0.0
        %1181 = vmatmul.mubr.f32.gmra.mxu0 %v962
        %v1182 = vpop.f32.mrf.mxu0
        %v1183 = vadd.f32 %v1086, %v1182
        %v1184 = vpop.f32.mrf.mxu0
        %1185 = vmatprep.mubr.f32.mxu0 0.0
        %1186 = vmatmul.mubr.f32.gmra.mxu0 %v965
        %v1187 = vpop.f32.mrf.mxu0
        %v1188 = vadd.f32 %v1086, %v1187
        %v1189 = vpop.f32.mrf.mxu0
        %1190 = vmatprep.mubr.f32.mxu0 0.0
        %1191 = vmatmul.mubr.f32.gmra.mxu0 %v968
        %v1192 = vpop.f32.mrf.mxu0
        %v1193 = vadd.f32 %v1086, %v1192
        %v1194 = vpop.f32.mrf.mxu0
        %1195 = vdwg.mxu0
        %v1196 = vld [vmem:[%s7] sm:$0xff]
        %v1197 = vld [vmem:[%s7 + $0x8] sm:$0xff]
        %v1198 = vld [vmem:[%s7 + $0x10] sm:$0xf]
        %v1200 = vsel %vm578, %v602, 0
        %v1203 = vsel %vm578, %v603, 0
        %v1206 = vsel %vm578, %v604, 0
        %v1209 = vsel %vm578, %v605, 0
        %v1212 = vsel %vm578, %v606, 0
        %v1215 = vsel %vm578, %v607, 0
        %v1218 = vsel %vm578, %v608, 0
        %v1221 = vsel %vm578, %v609, 0
        %v1224 = vsel %vm671, %v1198, 0
        %1226 = vmatprep.subr.mxu0 0.0
        %1227 = vmatpush1.msra.mxu0 0.0
        %1228 = vmatprep.subr.mxu0 0.0
        %1229 = vmatpush1.msra.mxu0 0.0
        %1230 = vmatprep.subr.mxu0 0.0
        %1231 = vmatpush1.msra.mxu0 0.0
        %1232 = vmatprep.subr.mxu0 0.0
        %1233 = vmatpush1.msra.mxu0 0.0
        %1234 = vmatprep.subr.mxu0 0.0
        %1235 = vmatpush1.msra.mxu0 0.0
        %1236 = vmatprep.subr.mxu0 0.0
        %1237 = vmatpush1.msra.mxu0 0.0
        %1238 = vmatprep.subr.mxu0 0.0
        %1239 = vmatpush1.msra.mxu0 0.0
        %1240 = vmatprep.subr.mxu0 0.0
        %1241 = vmatpush1.msra.mxu0 0.0
        %1242 = vmatprep.subr.mxu0 0.0
        %1243 = vmatpush1.msra.mxu0 0.0
        %1244 = vmatprep.subr.mxu0 0.0
        %1245 = vmatpush1.msra.mxu0 0.0
        %1246 = vmatprep.subr.mxu0 0.0
        %1247 = vmatpush1.msra.mxu0 0.0
        %1248 = vmatprep.subr.mxu0 0.0
        %1249 = vmatpush1.msra.mxu0 0.0
        %1250 = vmatprep.subr.mxu0 0.0
        %1251 = vmatpush1.msra.mxu0 0.0
        %1252 = vmatprep.subr.mxu0 0.0
        %1253 = vmatpush1.msra.mxu0 %v1224
        %1254 = vmatprep.subr.mxu0 0.0
        %1255 = vmatpush1.msra.mxu0 %v1197
        %1256 = vmatprep.subr.mxu0 0.0
        %1257 = vmatpush1.msra.mxu0 %v1196
        %1258 = vmatprep.subr.mxu0 0.0
        %1259 = vmatpush2.msra.mxu0 0.0
        %1260 = vmatprep.subr.mxu0 0.0
        %1261 = vmatpush2.msra.mxu0 0.0
        %1262 = vmatprep.subr.mxu0 0.0
        %1263 = vmatpush2.msra.mxu0 0.0
        %1264 = vmatprep.subr.mxu0 0.0
        %1265 = vmatpush2.msra.mxu0 0.0
        %1266 = vmatprep.subr.mxu0 0.0
        %1267 = vmatpush2.msra.mxu0 0.0
        %1268 = vmatprep.subr.mxu0 0.0
        %1269 = vmatpush2.msra.mxu0 0.0
        %1270 = vmatprep.subr.mxu0 0.0
        %1271 = vmatpush2.msra.mxu0 0.0
        %1272 = vmatprep.subr.mxu0 0.0
        %1273 = vmatpush2.msra.mxu0 0.0
        %1274 = vmatprep.subr.mxu0 0.0
        %1275 = vmatpush2.msra.mxu0 0.0
        %1276 = vmatprep.subr.mxu0 0.0
        %1277 = vmatpush2.msra.mxu0 0.0
        %1278 = vmatprep.subr.mxu0 0.0
        %1279 = vmatpush2.msra.mxu0 0.0
        %1280 = vmatprep.subr.mxu0 0.0
        %1281 = vmatpush2.msra.mxu0 0.0
        %1282 = vmatprep.subr.mxu0 0.0
        %1283 = vmatpush2.msra.mxu0 0.0
        %1284 = vmatprep.subr.mxu0 0.0
        %1285 = vmatpush2.msra.mxu0 0.0
        %1286 = vmatprep.subr.mxu0 0.0
        %1287 = vmatpush2.msra.mxu0 0.0
        %1288 = vmatprep.subr.mxu0 0.0
        %1289 = vmatpush2.msra.mxu0 0.0
        %1290 = vmatprep.mubr.f32.mxu0 0.0
        %1291 = vmatmul.mubr.f32.gmra.mxu0 %v1200
        %v1292 = vpop.f32.mrf.mxu0
        %v1293 = vadd.f32 0.0, %v1292
        %v1294 = vpop.f32.mrf.mxu0
        %1295 = vmatprep.mubr.f32.mxu0 0.0
        %1296 = vmatmul.mubr.f32.gmra.mxu0 %v1203
        %v1297 = vpop.f32.mrf.mxu0
        %v1298 = vadd.f32 0.0, %v1297
        %v1299 = vpop.f32.mrf.mxu0
        %1300 = vmatprep.mubr.f32.mxu0 0.0
        %1301 = vmatmul.mubr.f32.gmra.mxu0 %v1206
        %v1302 = vpop.f32.mrf.mxu0
        %v1303 = vadd.f32 0.0, %v1302
        %v1304 = vpop.f32.mrf.mxu0
        %1305 = vmatprep.mubr.f32.mxu0 0.0
        %1306 = vmatmul.mubr.f32.gmra.mxu0 %v1209
        %v1307 = vpop.f32.mrf.mxu0
        %v1308 = vadd.f32 0.0, %v1307
        %v1309 = vpop.f32.mrf.mxu0
        %1310 = vmatprep.mubr.f32.mxu0 0.0
        %1311 = vmatmul.mubr.f32.gmra.mxu0 %v1212
        %v1312 = vpop.f32.mrf.mxu0
        %v1313 = vadd.f32 0.0, %v1312
        %v1314 = vpop.f32.mrf.mxu0
        %1315 = vmatprep.mubr.f32.mxu0 0.0
        %1316 = vmatmul.mubr.f32.gmra.mxu0 %v1215
        %v1317 = vpop.f32.mrf.mxu0
        %v1318 = vadd.f32 0.0, %v1317
        %v1319 = vpop.f32.mrf.mxu0
        %1320 = vmatprep.mubr.f32.mxu0 0.0
        %1321 = vmatmul.mubr.f32.gmra.mxu0 %v1218
        %v1322 = vpop.f32.mrf.mxu0
        %v1323 = vadd.f32 0.0, %v1322
        %v1324 = vpop.f32.mrf.mxu0
        %1325 = vmatprep.mubr.f32.mxu0 0.0
        %1326 = vmatmul.mubr.f32.gmra.mxu0 %v1221
        %v1327 = vpop.f32.mrf.mxu0
        %v1328 = vadd.f32 0.0, %v1327
        %v1329 = vpop.f32.mrf.mxu0
        %1330 = vdwg.mxu0
        %v1331 = vadd.f32 %v1158, %v1293
        %v1332 = vadd.f32 %v1163, %v1298
        %v1333 = vadd.f32 %v1168, %v1303
        %v1334 = vadd.f32 %v1173, %v1308
        %v1335 = vadd.f32 %v1178, %v1313
        %v1336 = vadd.f32 %v1183, %v1318
        %v1337 = vadd.f32 %v1188, %v1323
        %v1338 = vadd.f32 %v1193, %v1328
        %v1339 = vlaneseq
        %v1340 = vshrl.u32 %v1339, 7
        %v1341 = vsub.s32 0, %v1340
        %v1342 = vrot.slane %v934, %v1341
        %v1343 = vmul.f32 %v1342, %v1331
        %v1344 = vmul.f32 %v1342, %v1332
        %v1345 = vmul.f32 %v1342, %v1333
        %v1346 = vmul.f32 %v1342, %v1334
        %v1347 = vmul.f32 %v1342, %v1335
        %v1348 = vmul.f32 %v1342, %v1336
        %v1349 = vmul.f32 %v1342, %v1337
        %v1350 = vmul.f32 %v1342, %v1338
        %v1351 = vld [vmem:[%s9] sm:$0xff]
        %v1352 = vld [vmem:[%s9 + $0x8] sm:$0xff]
        %v1353 = vld [vmem:[%s9 + $0x10] sm:$0xff]
        %v1354 = vld [vmem:[%s9 + $0x18] sm:$0xff]
        %v1355 = vld [vmem:[%s9 + $0x20] sm:$0xff]
        %v1356 = vld [vmem:[%s10] sm:$0x1]
        %v1358 = vlaneseq
        %v1359 = vshrl.u32 %v1358, 7
        %v1360 = vsub.s32 0, %v1359
        %v1361 = vrot.slane %v1356, %v1360
        %vm1363 = vcmask 326656
        %v1365 = vsel %vm1363, %v1343, 0
        %v1368 = vsel %vm1363, %v1344, 0
        %v1371 = vsel %vm1363, %v1345, 0
        %v1374 = vsel %vm1363, %v1346, 0
        %v1377 = vsel %vm1363, %v1347, 0
        %v1380 = vsel %vm1363, %v1348, 0
        %v1383 = vsel %vm1363, %v1349, 0
        %v1386 = vsel %vm1363, %v1350, 0
        %1388 = vmatprep.subr.mxu0 0.0
        %1389 = vmatpush1.msra.mxu0 0.0
        %1390 = vmatprep.subr.mxu0 0.0
        %1391 = vmatpush1.msra.mxu0 0.0
        %1392 = vmatprep.subr.mxu0 0.0
        %1393 = vmatpush1.msra.mxu0 0.0
        %1394 = vmatprep.subr.mxu0 0.0
        %1395 = vmatpush1.msra.mxu0 0.0
        %1396 = vmatprep.subr.mxu0 0.0
        %1397 = vmatpush1.msra.mxu0 0.0
        %1398 = vmatprep.subr.mxu0 0.0
        %1399 = vmatpush1.msra.mxu0 0.0
        %1400 = vmatprep.subr.mxu0 0.0
        %1401 = vmatpush1.msra.mxu0 0.0
        %1402 = vmatprep.subr.mxu0 0.0
        %1403 = vmatpush1.msra.mxu0 0.0
        %1404 = vmatprep.subr.mxu0 0.0
        %1405 = vmatpush1.msra.mxu0 0.0
        %1406 = vmatprep.subr.mxu0 0.0
        %1407 = vmatpush1.msra.mxu0 0.0
        %1408 = vmatprep.subr.mxu0 0.0
        %1409 = vmatpush1.msra.mxu0 0.0
        %1410 = vmatprep.subr.mxu0 0.0
        %1411 = vmatpush1.msra.mxu0 %v1355
        %1412 = vmatprep.subr.mxu0 0.0
        %1413 = vmatpush1.msra.mxu0 %v1354
        %1414 = vmatprep.subr.mxu0 0.0
        %1415 = vmatpush1.msra.mxu0 %v1353
        %1416 = vmatprep.subr.mxu0 0.0
        %1417 = vmatpush1.msra.mxu0 %v1352
        %1418 = vmatprep.subr.mxu0 0.0
        %1419 = vmatpush1.msra.mxu0 %v1351
        %1420 = vmatprep.subr.mxu0 0.0
        %1421 = vmatpush2.msra.mxu0 0.0
        %1422 = vmatprep.subr.mxu0 0.0
        %1423 = vmatpush2.msra.mxu0 0.0
        %1424 = vmatprep.subr.mxu0 0.0
        %1425 = vmatpush2.msra.mxu0 0.0
        %1426 = vmatprep.subr.mxu0 0.0
        %1427 = vmatpush2.msra.mxu0 0.0
        %1428 = vmatprep.subr.mxu0 0.0
        %1429 = vmatpush2.msra.mxu0 0.0
        %1430 = vmatprep.subr.mxu0 0.0
        %1431 = vmatpush2.msra.mxu0 0.0
        %1432 = vmatprep.subr.mxu0 0.0
        %1433 = vmatpush2.msra.mxu0 0.0
        %1434 = vmatprep.subr.mxu0 0.0
        %1435 = vmatpush2.msra.mxu0 0.0
        %1436 = vmatprep.subr.mxu0 0.0
        %1437 = vmatpush2.msra.mxu0 0.0
        %1438 = vmatprep.subr.mxu0 0.0
        %1439 = vmatpush2.msra.mxu0 0.0
        %1440 = vmatprep.subr.mxu0 0.0
        %1441 = vmatpush2.msra.mxu0 0.0
        %1442 = vmatprep.subr.mxu0 0.0
        %1443 = vmatpush2.msra.mxu0 0.0
        %1444 = vmatprep.subr.mxu0 0.0
        %1445 = vmatpush2.msra.mxu0 0.0
        %1446 = vmatprep.subr.mxu0 0.0
        %1447 = vmatpush2.msra.mxu0 0.0
        %1448 = vmatprep.subr.mxu0 0.0
        %1449 = vmatpush2.msra.mxu0 0.0
        %1450 = vmatprep.subr.mxu0 0.0
        %1451 = vmatpush2.msra.mxu0 0.0
        %1452 = vmatprep.mubr.f32.mxu0 0.0
        %1453 = vmatmul.mubr.f32.gmra.mxu0 %v1365
        %v1454 = vpop.f32.mrf.mxu0
        %v1455 = vadd.f32 %v1361, %v1454
        %v1456 = vpop.f32.mrf.mxu0
        %1457 = vmatprep.mubr.f32.mxu0 0.0
        %1458 = vmatmul.mubr.f32.gmra.mxu0 %v1368
        %v1459 = vpop.f32.mrf.mxu0
        %v1460 = vadd.f32 %v1361, %v1459
        %v1461 = vpop.f32.mrf.mxu0
        %1462 = vmatprep.mubr.f32.mxu0 0.0
        %1463 = vmatmul.mubr.f32.gmra.mxu0 %v1371
        %v1464 = vpop.f32.mrf.mxu0
        %v1465 = vadd.f32 %v1361, %v1464
        %v1466 = vpop.f32.mrf.mxu0
        %1467 = vmatprep.mubr.f32.mxu0 0.0
        %1468 = vmatmul.mubr.f32.gmra.mxu0 %v1374
        %v1469 = vpop.f32.mrf.mxu0
        %v1470 = vadd.f32 %v1361, %v1469
        %v1471 = vpop.f32.mrf.mxu0
        %1472 = vmatprep.mubr.f32.mxu0 0.0
        %1473 = vmatmul.mubr.f32.gmra.mxu0 %v1377
        %v1474 = vpop.f32.mrf.mxu0
        %v1475 = vadd.f32 %v1361, %v1474
        %v1476 = vpop.f32.mrf.mxu0
        %1477 = vmatprep.mubr.f32.mxu0 0.0
        %1478 = vmatmul.mubr.f32.gmra.mxu0 %v1380
        %v1479 = vpop.f32.mrf.mxu0
        %v1480 = vadd.f32 %v1361, %v1479
        %v1481 = vpop.f32.mrf.mxu0
        %1482 = vmatprep.mubr.f32.mxu0 0.0
        %1483 = vmatmul.mubr.f32.gmra.mxu0 %v1383
        %v1484 = vpop.f32.mrf.mxu0
        %v1485 = vadd.f32 %v1361, %v1484
        %v1486 = vpop.f32.mrf.mxu0
        %1487 = vmatprep.mubr.f32.mxu0 0.0
        %1488 = vmatmul.mubr.f32.gmra.mxu0 %v1386
        %v1489 = vpop.f32.mrf.mxu0
        %v1490 = vadd.f32 %v1361, %v1489
        %v1491 = vpop.f32.mrf.mxu0
        %1492 = vdwg.mxu0
        %v1493 = vld [vmem:[%s11] sm:$0xff]
        %v1494 = vld [vmem:[%s11 + $0x8] sm:$0xff]
        %v1495 = vld [vmem:[%s11 + $0x10] sm:$0xf]
        %v1497 = vsel %vm578, %v1455, 0
        %v1500 = vsel %vm578, %v1460, 0
        %v1503 = vsel %vm578, %v1465, 0
        %v1506 = vsel %vm578, %v1470, 0
        %v1509 = vsel %vm578, %v1475, 0
        %v1512 = vsel %vm578, %v1480, 0
        %v1515 = vsel %vm578, %v1485, 0
        %v1518 = vsel %vm578, %v1490, 0
        %v1521 = vsel %vm671, %v1495, 0
        %1523 = vmatprep.subr.mxu0 0.0
        %1524 = vmatpush1.msra.mxu0 0.0
        %1525 = vmatprep.subr.mxu0 0.0
        %1526 = vmatpush1.msra.mxu0 0.0
        %1527 = vmatprep.subr.mxu0 0.0
        %1528 = vmatpush1.msra.mxu0 0.0
        %1529 = vmatprep.subr.mxu0 0.0
        %1530 = vmatpush1.msra.mxu0 0.0
        %1531 = vmatprep.subr.mxu0 0.0
        %1532 = vmatpush1.msra.mxu0 0.0
        %1533 = vmatprep.subr.mxu0 0.0
        %1534 = vmatpush1.msra.mxu0 0.0
        %1535 = vmatprep.subr.mxu0 0.0
        %1536 = vmatpush1.msra.mxu0 0.0
        %1537 = vmatprep.subr.mxu0 0.0
        %1538 = vmatpush1.msra.mxu0 0.0
        %1539 = vmatprep.subr.mxu0 0.0
        %1540 = vmatpush1.msra.mxu0 0.0
        %1541 = vmatprep.subr.mxu0 0.0
        %1542 = vmatpush1.msra.mxu0 0.0
        %1543 = vmatprep.subr.mxu0 0.0
        %1544 = vmatpush1.msra.mxu0 0.0
        %1545 = vmatprep.subr.mxu0 0.0
        %1546 = vmatpush1.msra.mxu0 0.0
        %1547 = vmatprep.subr.mxu0 0.0
        %1548 = vmatpush1.msra.mxu0 0.0
        %1549 = vmatprep.subr.mxu0 0.0
        %1550 = vmatpush1.msra.mxu0 %v1521
        %1551 = vmatprep.subr.mxu0 0.0
        %1552 = vmatpush1.msra.mxu0 %v1494
        %1553 = vmatprep.subr.mxu0 0.0
        %1554 = vmatpush1.msra.mxu0 %v1493
        %1555 = vmatprep.subr.mxu0 0.0
        %1556 = vmatpush2.msra.mxu0 0.0
        %1557 = vmatprep.subr.mxu0 0.0
        %1558 = vmatpush2.msra.mxu0 0.0
        %1559 = vmatprep.subr.mxu0 0.0
        %1560 = vmatpush2.msra.mxu0 0.0
        %1561 = vmatprep.subr.mxu0 0.0
        %1562 = vmatpush2.msra.mxu0 0.0
        %1563 = vmatprep.subr.mxu0 0.0
        %1564 = vmatpush2.msra.mxu0 0.0
        %1565 = vmatprep.subr.mxu0 0.0
        %1566 = vmatpush2.msra.mxu0 0.0
        %1567 = vmatprep.subr.mxu0 0.0
        %1568 = vmatpush2.msra.mxu0 0.0
        %1569 = vmatprep.subr.mxu0 0.0
        %1570 = vmatpush2.msra.mxu0 0.0
        %1571 = vmatprep.subr.mxu0 0.0
        %1572 = vmatpush2.msra.mxu0 0.0
        %1573 = vmatprep.subr.mxu0 0.0
        %1574 = vmatpush2.msra.mxu0 0.0
        %1575 = vmatprep.subr.mxu0 0.0
        %1576 = vmatpush2.msra.mxu0 0.0
        %1577 = vmatprep.subr.mxu0 0.0
        %1578 = vmatpush2.msra.mxu0 0.0
        %1579 = vmatprep.subr.mxu0 0.0
        %1580 = vmatpush2.msra.mxu0 0.0
        %1581 = vmatprep.subr.mxu0 0.0
        %1582 = vmatpush2.msra.mxu0 0.0
        %1583 = vmatprep.subr.mxu0 0.0
        %1584 = vmatpush2.msra.mxu0 0.0
        %1585 = vmatprep.subr.mxu0 0.0
        %1586 = vmatpush2.msra.mxu0 0.0
        %1587 = vmatprep.mubr.f32.mxu0 0.0
        %1588 = vmatmul.mubr.f32.gmra.mxu0 %v1497
        %v1589 = vpop.f32.mrf.mxu0
        %v1590 = vadd.f32 0.0, %v1589
        %v1591 = vpop.f32.mrf.mxu0
        %1592 = vmatprep.mubr.f32.mxu0 0.0
        %1593 = vmatmul.mubr.f32.gmra.mxu0 %v1500
        %v1594 = vpop.f32.mrf.mxu0
        %v1595 = vadd.f32 0.0, %v1594
        %v1596 = vpop.f32.mrf.mxu0
        %1597 = vmatprep.mubr.f32.mxu0 0.0
        %1598 = vmatmul.mubr.f32.gmra.mxu0 %v1503
        %v1599 = vpop.f32.mrf.mxu0
        %v1600 = vadd.f32 0.0, %v1599
        %v1601 = vpop.f32.mrf.mxu0
        %1602 = vmatprep.mubr.f32.mxu0 0.0
        %1603 = vmatmul.mubr.f32.gmra.mxu0 %v1506
        %v1604 = vpop.f32.mrf.mxu0
        %v1605 = vadd.f32 0.0, %v1604
        %v1606 = vpop.f32.mrf.mxu0
        %1607 = vmatprep.mubr.f32.mxu0 0.0
        %1608 = vmatmul.mubr.f32.gmra.mxu0 %v1509
        %v1609 = vpop.f32.mrf.mxu0
        %v1610 = vadd.f32 0.0, %v1609
        %v1611 = vpop.f32.mrf.mxu0
        %1612 = vmatprep.mubr.f32.mxu0 0.0
        %1613 = vmatmul.mubr.f32.gmra.mxu0 %v1512
        %v1614 = vpop.f32.mrf.mxu0
        %v1615 = vadd.f32 0.0, %v1614
        %v1616 = vpop.f32.mrf.mxu0
        %1617 = vmatprep.mubr.f32.mxu0 0.0
        %1618 = vmatmul.mubr.f32.gmra.mxu0 %v1515
        %v1619 = vpop.f32.mrf.mxu0
        %v1620 = vadd.f32 0.0, %v1619
        %v1621 = vpop.f32.mrf.mxu0
        %1622 = vmatprep.mubr.f32.mxu0 0.0
        %1623 = vmatmul.mubr.f32.gmra.mxu0 %v1518
        %v1624 = vpop.f32.mrf.mxu0
        %v1625 = vadd.f32 0.0, %v1624
        %v1626 = vpop.f32.mrf.mxu0
        %1627 = vdwg.mxu0
        %v1628 = vadd.f32 %v1040, %v1590
        %v1629 = vadd.f32 %v1045, %v1595
        %v1630 = vadd.f32 %v1050, %v1600
        %v1631 = vadd.f32 %v1055, %v1605
        %v1632 = vadd.f32 %v1060, %v1610
        %v1633 = vadd.f32 %v1065, %v1615
        %v1634 = vadd.f32 %v1070, %v1620
        %v1635 = vadd.f32 %v1075, %v1625
        %v1637 = vsel %vm578, %v633, 0
        %v1640 = vsel %vm578, %v634, 0
        %v1643 = vsel %vm578, %v635, 0
        %v1646 = vsel %vm578, %v636, 0
        %v1649 = vsel %vm578, %v637, 0
        %v1652 = vsel %vm578, %v638, 0
        %v1655 = vsel %vm578, %v639, 0
        %v1658 = vsel %vm578, %v640, 0
        %1660 = vmatprep.subr.mxu0 0.0
        %1661 = vmatpush1.msra.mxu0 0.0
        %1662 = vmatprep.subr.mxu0 0.0
        %1663 = vmatpush1.msra.mxu0 0.0
        %1664 = vmatprep.subr.mxu0 0.0
        %1665 = vmatpush1.msra.mxu0 0.0
        %1666 = vmatprep.subr.mxu0 0.0
        %1667 = vmatpush1.msra.mxu0 0.0
        %1668 = vmatprep.subr.mxu0 0.0
        %1669 = vmatpush1.msra.mxu0 0.0
        %1670 = vmatprep.subr.mxu0 0.0
        %1671 = vmatpush1.msra.mxu0 0.0
        %1672 = vmatprep.subr.mxu0 0.0
        %1673 = vmatpush1.msra.mxu0 0.0
        %1674 = vmatprep.subr.mxu0 0.0
        %1675 = vmatpush1.msra.mxu0 0.0
        %1676 = vmatprep.subr.mxu0 0.0
        %1677 = vmatpush1.msra.mxu0 0.0
        %1678 = vmatprep.subr.mxu0 0.0
        %1679 = vmatpush1.msra.mxu0 0.0
        %1680 = vmatprep.subr.mxu0 0.0
        %1681 = vmatpush1.msra.mxu0 0.0
        %1682 = vmatprep.subr.mxu0 0.0
        %1683 = vmatpush1.msra.mxu0 0.0
        %1684 = vmatprep.subr.mxu0 0.0
        %1685 = vmatpush1.msra.mxu0 0.0
        %1686 = vmatprep.subr.mxu0 0.0
        %1687 = vmatpush1.msra.mxu0 %v1224
        %1688 = vmatprep.subr.mxu0 0.0
        %1689 = vmatpush1.msra.mxu0 %v1197
        %1690 = vmatprep.subr.mxu0 0.0
        %1691 = vmatpush1.msra.mxu0 %v1196
        %1692 = vmatprep.subr.mxu0 0.0
        %1693 = vmatpush2.msra.mxu0 0.0
        %1694 = vmatprep.subr.mxu0 0.0
        %1695 = vmatpush2.msra.mxu0 0.0
        %1696 = vmatprep.subr.mxu0 0.0
        %1697 = vmatpush2.msra.mxu0 0.0
        %1698 = vmatprep.subr.mxu0 0.0
        %1699 = vmatpush2.msra.mxu0 0.0
        %1700 = vmatprep.subr.mxu0 0.0
        %1701 = vmatpush2.msra.mxu0 0.0
        %1702 = vmatprep.subr.mxu0 0.0
        %1703 = vmatpush2.msra.mxu0 0.0
        %1704 = vmatprep.subr.mxu0 0.0
        %1705 = vmatpush2.msra.mxu0 0.0
        %1706 = vmatprep.subr.mxu0 0.0
        %1707 = vmatpush2.msra.mxu0 0.0
        %1708 = vmatprep.subr.mxu0 0.0
        %1709 = vmatpush2.msra.mxu0 0.0
        %1710 = vmatprep.subr.mxu0 0.0
        %1711 = vmatpush2.msra.mxu0 0.0
        %1712 = vmatprep.subr.mxu0 0.0
        %1713 = vmatpush2.msra.mxu0 0.0
        %1714 = vmatprep.subr.mxu0 0.0
        %1715 = vmatpush2.msra.mxu0 0.0
        %1716 = vmatprep.subr.mxu0 0.0
        %1717 = vmatpush2.msra.mxu0 0.0
        %1718 = vmatprep.subr.mxu0 0.0
        %1719 = vmatpush2.msra.mxu0 0.0
        %1720 = vmatprep.subr.mxu0 0.0
        %1721 = vmatpush2.msra.mxu0 0.0
        %1722 = vmatprep.subr.mxu0 0.0
        %1723 = vmatpush2.msra.mxu0 0.0
        %1724 = vmatprep.mubr.f32.mxu0 0.0
        %1725 = vmatmul.mubr.f32.gmra.mxu0 %v1637
        %v1726 = vpop.f32.mrf.mxu0
        %v1727 = vadd.f32 0.0, %v1726
        %v1728 = vpop.f32.mrf.mxu0
        %1729 = vmatprep.mubr.f32.mxu0 0.0
        %1730 = vmatmul.mubr.f32.gmra.mxu0 %v1640
        %v1731 = vpop.f32.mrf.mxu0
        %v1732 = vadd.f32 0.0, %v1731
        %v1733 = vpop.f32.mrf.mxu0
        %1734 = vmatprep.mubr.f32.mxu0 0.0
        %1735 = vmatmul.mubr.f32.gmra.mxu0 %v1643
        %v1736 = vpop.f32.mrf.mxu0
        %v1737 = vadd.f32 0.0, %v1736
        %v1738 = vpop.f32.mrf.mxu0
        %1739 = vmatprep.mubr.f32.mxu0 0.0
        %1740 = vmatmul.mubr.f32.gmra.mxu0 %v1646
        %v1741 = vpop.f32.mrf.mxu0
        %v1742 = vadd.f32 0.0, %v1741
        %v1743 = vpop.f32.mrf.mxu0
        %1744 = vmatprep.mubr.f32.mxu0 0.0
        %1745 = vmatmul.mubr.f32.gmra.mxu0 %v1649
        %v1746 = vpop.f32.mrf.mxu0
        %v1747 = vadd.f32 0.0, %v1746
        %v1748 = vpop.f32.mrf.mxu0
        %1749 = vmatprep.mubr.f32.mxu0 0.0
        %1750 = vmatmul.mubr.f32.gmra.mxu0 %v1652
        %v1751 = vpop.f32.mrf.mxu0
        %v1752 = vadd.f32 0.0, %v1751
        %v1753 = vpop.f32.mrf.mxu0
        %1754 = vmatprep.mubr.f32.mxu0 0.0
        %1755 = vmatmul.mubr.f32.gmra.mxu0 %v1655
        %v1756 = vpop.f32.mrf.mxu0
        %v1757 = vadd.f32 0.0, %v1756
        %v1758 = vpop.f32.mrf.mxu0
        %1759 = vmatprep.mubr.f32.mxu0 0.0
        %1760 = vmatmul.mubr.f32.gmra.mxu0 %v1658
        %v1761 = vpop.f32.mrf.mxu0
        %v1762 = vadd.f32 0.0, %v1761
        %v1763 = vpop.f32.mrf.mxu0
        %1764 = vdwg.mxu0
        %v1765 = vadd.f32 %v1158, %v1727
        %v1766 = vadd.f32 %v1163, %v1732
        %v1767 = vadd.f32 %v1168, %v1737
        %v1768 = vadd.f32 %v1173, %v1742
        %v1769 = vadd.f32 %v1178, %v1747
        %v1770 = vadd.f32 %v1183, %v1752
        %v1771 = vadd.f32 %v1188, %v1757
        %v1772 = vadd.f32 %v1193, %v1762
        %v1773 = vlaneseq
        %v1774 = vshrl.u32 %v1773, 7
        %v1775 = vsub.s32 1, %v1774
        %v1776 = vrot.slane %v934, %v1775
        %v1777 = vmul.f32 %v1776, %v1765
        %v1778 = vmul.f32 %v1776, %v1766
        %v1779 = vmul.f32 %v1776, %v1767
        %v1780 = vmul.f32 %v1776, %v1768
        %v1781 = vmul.f32 %v1776, %v1769
        %v1782 = vmul.f32 %v1776, %v1770
        %v1783 = vmul.f32 %v1776, %v1771
        %v1784 = vmul.f32 %v1776, %v1772
        %v1786 = vsel %vm1363, %v1777, 0
        %v1789 = vsel %vm1363, %v1778, 0
        %v1792 = vsel %vm1363, %v1779, 0
        %v1795 = vsel %vm1363, %v1780, 0
        %v1798 = vsel %vm1363, %v1781, 0
        %v1801 = vsel %vm1363, %v1782, 0
        %v1804 = vsel %vm1363, %v1783, 0
        %v1807 = vsel %vm1363, %v1784, 0
        %1809 = vmatprep.subr.mxu0 0.0
        %1810 = vmatpush1.msra.mxu0 0.0
        %1811 = vmatprep.subr.mxu0 0.0
        %1812 = vmatpush1.msra.mxu0 0.0
        %1813 = vmatprep.subr.mxu0 0.0
        %1814 = vmatpush1.msra.mxu0 0.0
        %1815 = vmatprep.subr.mxu0 0.0
        %1816 = vmatpush1.msra.mxu0 0.0
        %1817 = vmatprep.subr.mxu0 0.0
        %1818 = vmatpush1.msra.mxu0 0.0
        %1819 = vmatprep.subr.mxu0 0.0
        %1820 = vmatpush1.msra.mxu0 0.0
        %1821 = vmatprep.subr.mxu0 0.0
        %1822 = vmatpush1.msra.mxu0 0.0
        %1823 = vmatprep.subr.mxu0 0.0
        %1824 = vmatpush1.msra.mxu0 0.0
        %1825 = vmatprep.subr.mxu0 0.0
        %1826 = vmatpush1.msra.mxu0 0.0
        %1827 = vmatprep.subr.mxu0 0.0
        %1828 = vmatpush1.msra.mxu0 0.0
        %1829 = vmatprep.subr.mxu0 0.0
        %1830 = vmatpush1.msra.mxu0 0.0
        %1831 = vmatprep.subr.mxu0 0.0
        %1832 = vmatpush1.msra.mxu0 %v1355
        %1833 = vmatprep.subr.mxu0 0.0
        %1834 = vmatpush1.msra.mxu0 %v1354
        %1835 = vmatprep.subr.mxu0 0.0
        %1836 = vmatpush1.msra.mxu0 %v1353
        %1837 = vmatprep.subr.mxu0 0.0
        %1838 = vmatpush1.msra.mxu0 %v1352
        %1839 = vmatprep.subr.mxu0 0.0
        %1840 = vmatpush1.msra.mxu0 %v1351
        %1841 = vmatprep.subr.mxu0 0.0
        %1842 = vmatpush2.msra.mxu0 0.0
        %1843 = vmatprep.subr.mxu0 0.0
        %1844 = vmatpush2.msra.mxu0 0.0
        %1845 = vmatprep.subr.mxu0 0.0
        %1846 = vmatpush2.msra.mxu0 0.0
        %1847 = vmatprep.subr.mxu0 0.0
        %1848 = vmatpush2.msra.mxu0 0.0
        %1849 = vmatprep.subr.mxu0 0.0
        %1850 = vmatpush2.msra.mxu0 0.0
        %1851 = vmatprep.subr.mxu0 0.0
        %1852 = vmatpush2.msra.mxu0 0.0
        %1853 = vmatprep.subr.mxu0 0.0
        %1854 = vmatpush2.msra.mxu0 0.0
        %1855 = vmatprep.subr.mxu0 0.0
        %1856 = vmatpush2.msra.mxu0 0.0
        %1857 = vmatprep.subr.mxu0 0.0
        %1858 = vmatpush2.msra.mxu0 0.0
        %1859 = vmatprep.subr.mxu0 0.0
        %1860 = vmatpush2.msra.mxu0 0.0
        %1861 = vmatprep.subr.mxu0 0.0
        %1862 = vmatpush2.msra.mxu0 0.0
        %1863 = vmatprep.subr.mxu0 0.0
        %1864 = vmatpush2.msra.mxu0 0.0
        %1865 = vmatprep.subr.mxu0 0.0
        %1866 = vmatpush2.msra.mxu0 0.0
        %1867 = vmatprep.subr.mxu0 0.0
        %1868 = vmatpush2.msra.mxu0 0.0
        %1869 = vmatprep.subr.mxu0 0.0
        %1870 = vmatpush2.msra.mxu0 0.0
        %1871 = vmatprep.subr.mxu0 0.0
        %1872 = vmatpush2.msra.mxu0 0.0
        %1873 = vmatprep.mubr.f32.mxu0 0.0
        %1874 = vmatmul.mubr.f32.gmra.mxu0 %v1786
        %v1875 = vpop.f32.mrf.mxu0
        %v1876 = vadd.f32 %v1361, %v1875
        %v1877 = vpop.f32.mrf.mxu0
        %1878 = vmatprep.mubr.f32.mxu0 0.0
        %1879 = vmatmul.mubr.f32.gmra.mxu0 %v1789
        %v1880 = vpop.f32.mrf.mxu0
        %v1881 = vadd.f32 %v1361, %v1880
        %v1882 = vpop.f32.mrf.mxu0
        %1883 = vmatprep.mubr.f32.mxu0 0.0
        %1884 = vmatmul.mubr.f32.gmra.mxu0 %v1792
        %v1885 = vpop.f32.mrf.mxu0
        %v1886 = vadd.f32 %v1361, %v1885
        %v1887 = vpop.f32.mrf.mxu0
        %1888 = vmatprep.mubr.f32.mxu0 0.0
        %1889 = vmatmul.mubr.f32.gmra.mxu0 %v1795
        %v1890 = vpop.f32.mrf.mxu0
        %v1891 = vadd.f32 %v1361, %v1890
        %v1892 = vpop.f32.mrf.mxu0
        %1893 = vmatprep.mubr.f32.mxu0 0.0
        %1894 = vmatmul.mubr.f32.gmra.mxu0 %v1798
        %v1895 = vpop.f32.mrf.mxu0
        %v1896 = vadd.f32 %v1361, %v1895
        %v1897 = vpop.f32.mrf.mxu0
        %1898 = vmatprep.mubr.f32.mxu0 0.0
        %1899 = vmatmul.mubr.f32.gmra.mxu0 %v1801
        %v1900 = vpop.f32.mrf.mxu0
        %v1901 = vadd.f32 %v1361, %v1900
        %v1902 = vpop.f32.mrf.mxu0
        %1903 = vmatprep.mubr.f32.mxu0 0.0
        %1904 = vmatmul.mubr.f32.gmra.mxu0 %v1804
        %v1905 = vpop.f32.mrf.mxu0
        %v1906 = vadd.f32 %v1361, %v1905
        %v1907 = vpop.f32.mrf.mxu0
        %1908 = vmatprep.mubr.f32.mxu0 0.0
        %1909 = vmatmul.mubr.f32.gmra.mxu0 %v1807
        %v1910 = vpop.f32.mrf.mxu0
        %v1911 = vadd.f32 %v1361, %v1910
        %v1912 = vpop.f32.mrf.mxu0
        %1913 = vdwg.mxu0
        %s1914 = scalar_lea.vmem %s11, 24
        %v1915 = vld [vmem:[%s1914] sm:$0xff]
        %v1916 = vld [vmem:[%s1914 + $0x8] sm:$0xff]
        %v1917 = vld [vmem:[%s1914 + $0x10] sm:$0xf]
        %v1919 = vsel %vm578, %v1876, 0
        %v1922 = vsel %vm578, %v1881, 0
        %v1925 = vsel %vm578, %v1886, 0
        %v1928 = vsel %vm578, %v1891, 0
        %v1931 = vsel %vm578, %v1896, 0
        %v1934 = vsel %vm578, %v1901, 0
        %v1937 = vsel %vm578, %v1906, 0
        %v1940 = vsel %vm578, %v1911, 0
        %v1943 = vsel %vm671, %v1917, 0
        %1945 = vmatprep.subr.mxu0 0.0
        %1946 = vmatpush1.msra.mxu0 0.0
        %1947 = vmatprep.subr.mxu0 0.0
        %1948 = vmatpush1.msra.mxu0 0.0
        %1949 = vmatprep.subr.mxu0 0.0
        %1950 = vmatpush1.msra.mxu0 0.0
        %1951 = vmatprep.subr.mxu0 0.0
        %1952 = vmatpush1.msra.mxu0 0.0
        %1953 = vmatprep.subr.mxu0 0.0
        %1954 = vmatpush1.msra.mxu0 0.0
        %1955 = vmatprep.subr.mxu0 0.0
        %1956 = vmatpush1.msra.mxu0 0.0
        %1957 = vmatprep.subr.mxu0 0.0
        %1958 = vmatpush1.msra.mxu0 0.0
        %1959 = vmatprep.subr.mxu0 0.0
        %1960 = vmatpush1.msra.mxu0 0.0
        %1961 = vmatprep.subr.mxu0 0.0
        %1962 = vmatpush1.msra.mxu0 0.0
        %1963 = vmatprep.subr.mxu0 0.0
        %1964 = vmatpush1.msra.mxu0 0.0
        %1965 = vmatprep.subr.mxu0 0.0
        %1966 = vmatpush1.msra.mxu0 0.0
        %1967 = vmatprep.subr.mxu0 0.0
        %1968 = vmatpush1.msra.mxu0 0.0
        %1969 = vmatprep.subr.mxu0 0.0
        %1970 = vmatpush1.msra.mxu0 0.0
        %1971 = vmatprep.subr.mxu0 0.0
        %1972 = vmatpush1.msra.mxu0 %v1943
        %1973 = vmatprep.subr.mxu0 0.0
        %1974 = vmatpush1.msra.mxu0 %v1916
        %1975 = vmatprep.subr.mxu0 0.0
        %1976 = vmatpush1.msra.mxu0 %v1915
        %1977 = vmatprep.subr.mxu0 0.0
        %1978 = vmatpush2.msra.mxu0 0.0
        %1979 = vmatprep.subr.mxu0 0.0
        %1980 = vmatpush2.msra.mxu0 0.0
        %1981 = vmatprep.subr.mxu0 0.0
        %1982 = vmatpush2.msra.mxu0 0.0
        %1983 = vmatprep.subr.mxu0 0.0
        %1984 = vmatpush2.msra.mxu0 0.0
        %1985 = vmatprep.subr.mxu0 0.0
        %1986 = vmatpush2.msra.mxu0 0.0
        %1987 = vmatprep.subr.mxu0 0.0
        %1988 = vmatpush2.msra.mxu0 0.0
        %1989 = vmatprep.subr.mxu0 0.0
        %1990 = vmatpush2.msra.mxu0 0.0
        %1991 = vmatprep.subr.mxu0 0.0
        %1992 = vmatpush2.msra.mxu0 0.0
        %1993 = vmatprep.subr.mxu0 0.0
        %1994 = vmatpush2.msra.mxu0 0.0
        %1995 = vmatprep.subr.mxu0 0.0
        %1996 = vmatpush2.msra.mxu0 0.0
        %1997 = vmatprep.subr.mxu0 0.0
        %1998 = vmatpush2.msra.mxu0 0.0
        %1999 = vmatprep.subr.mxu0 0.0
        %2000 = vmatpush2.msra.mxu0 0.0
        %2001 = vmatprep.subr.mxu0 0.0
        %2002 = vmatpush2.msra.mxu0 0.0
        %2003 = vmatprep.subr.mxu0 0.0
        %2004 = vmatpush2.msra.mxu0 0.0
        %2005 = vmatprep.subr.mxu0 0.0
        %2006 = vmatpush2.msra.mxu0 0.0
        %2007 = vmatprep.subr.mxu0 0.0
        %2008 = vmatpush2.msra.mxu0 0.0
        %2009 = vmatprep.mubr.f32.mxu0 0.0
        %2010 = vmatmul.mubr.f32.gmra.mxu0 %v1919
        %v2011 = vpop.f32.mrf.mxu0
        %v2012 = vadd.f32 0.0, %v2011
        %v2013 = vpop.f32.mrf.mxu0
        %2014 = vmatprep.mubr.f32.mxu0 0.0
        %2015 = vmatmul.mubr.f32.gmra.mxu0 %v1922
        %v2016 = vpop.f32.mrf.mxu0
        %v2017 = vadd.f32 0.0, %v2016
        %v2018 = vpop.f32.mrf.mxu0
        %2019 = vmatprep.mubr.f32.mxu0 0.0
        %2020 = vmatmul.mubr.f32.gmra.mxu0 %v1925
        %v2021 = vpop.f32.mrf.mxu0
        %v2022 = vadd.f32 0.0, %v2021
        %v2023 = vpop.f32.mrf.mxu0
        %2024 = vmatprep.mubr.f32.mxu0 0.0
        %2025 = vmatmul.mubr.f32.gmra.mxu0 %v1928
        %v2026 = vpop.f32.mrf.mxu0
        %v2027 = vadd.f32 0.0, %v2026
        %v2028 = vpop.f32.mrf.mxu0
        %2029 = vmatprep.mubr.f32.mxu0 0.0
        %2030 = vmatmul.mubr.f32.gmra.mxu0 %v1931
        %v2031 = vpop.f32.mrf.mxu0
        %v2032 = vadd.f32 0.0, %v2031
        %v2033 = vpop.f32.mrf.mxu0
        %2034 = vmatprep.mubr.f32.mxu0 0.0
        %2035 = vmatmul.mubr.f32.gmra.mxu0 %v1934
        %v2036 = vpop.f32.mrf.mxu0
        %v2037 = vadd.f32 0.0, %v2036
        %v2038 = vpop.f32.mrf.mxu0
        %2039 = vmatprep.mubr.f32.mxu0 0.0
        %2040 = vmatmul.mubr.f32.gmra.mxu0 %v1937
        %v2041 = vpop.f32.mrf.mxu0
        %v2042 = vadd.f32 0.0, %v2041
        %v2043 = vpop.f32.mrf.mxu0
        %2044 = vmatprep.mubr.f32.mxu0 0.0
        %2045 = vmatmul.mubr.f32.gmra.mxu0 %v1940
        %v2046 = vpop.f32.mrf.mxu0
        %v2047 = vadd.f32 0.0, %v2046
        %v2048 = vpop.f32.mrf.mxu0
        %2049 = vdwg.mxu0
        %v2050 = vadd.f32 %v1628, %v2012
        %v2051 = vadd.f32 %v1629, %v2017
        %v2052 = vadd.f32 %v1630, %v2022
        %v2053 = vadd.f32 %v1631, %v2027
        %v2054 = vadd.f32 %v1632, %v2032
        %v2055 = vadd.f32 %v1633, %v2037
        %v2056 = vadd.f32 %v1634, %v2042
        %v2057 = vadd.f32 %v1635, %v2047
        %vm2058 = vcmask 490496
        %2059 = vst.msk [vmem:[%s568] sm:$0xff] %vm2058, %v2050
        %2060 = vst.msk [vmem:[%s568 + $0x8] sm:$0xff] %vm2058, %v2051
        %2061 = vst.msk [vmem:[%s568 + $0x10] sm:$0xff] %vm2058, %v2052
        %2062 = vst.msk [vmem:[%s568 + $0x18] sm:$0xff] %vm2058, %v2053
        %2063 = vst.msk [vmem:[%s568 + $0x20] sm:$0xff] %vm2058, %v2054
        %2064 = vst.msk [vmem:[%s568 + $0x28] sm:$0xff] %vm2058, %v2055
        %2065 = vst.msk [vmem:[%s568 + $0x30] sm:$0xff] %vm2058, %v2056
        %2066 = vst.msk [vmem:[%s568 + $0x38] sm:$0xff] %vm2058, %v2057
        %p2067 = scmp.lt.s32.totalorder %s24, 1
        %s2068 = scalar_select %p2067, %s24, 1
        %s2069 = smul.addr %s2068, 8
        %s2070 = smul.addr %s2069, 8
        %s2071 = scalar_lea.vmem %s13, %s2070
        // Predicated region
        $region111: #{tpu_custom_call.1} parent=105 // pred_check
          %p2072 = pneg %p320
        $region112: #{tpu_custom_call.1} parent=105 // pred_check_branch
          %2074 = sbr.rel (%p2072) target = $region114
        $region113: #{tpu_custom_call.1} parent=105 // pred_region
          _
        $region114: #{tpu_custom_call.1} parent=105 // pred_fallthru
          _
      $region106: #{tpu_custom_call.1} parent=5 // pred_fallthru
        _
      %p2075 = scmp.le.s32.totalorder 2, %s19
      // Predicated region
      $region115: #{tpu_custom_call.1} parent=5 // pred_check
        %p2076 = pneg %p2075
      $region116: #{tpu_custom_call.1} parent=5 // pred_check_branch
        %2078 = sbr.rel (%p2076) target = $region118
      $region117: #{tpu_custom_call.1} parent=5 // pred_region
        %s2079 = ssub.s32 %s19, 2
        // Predicated region
        $region119: #{tpu_custom_call.1} parent=117 // pred_check
          %p2080 = pneg %p326
        $region120: #{tpu_custom_call.1} parent=117 // pred_check_branch
          %2082 = sbr.rel (%p2080) target = $region122
        $region121: #{tpu_custom_call.1} parent=117 // pred_region
          %p2083 = scmp.lt.s32.totalorder %s25, 1
          %s2084 = scalar_select %p2083, %s25, 1
          %s2085 = smul.addr %s2084, 8
          %s2086 = smul.addr %s2085, 8
          %s2087 = scalar_lea.vmem %s13, %s2086
        $region122: #{tpu_custom_call.1} parent=117 // pred_fallthru
          _
      $region118: #{tpu_custom_call.1} parent=5 // pred_fallthru
        _
    $region6: #{tpu_custom_call.1} parent=1 // loop_footer
      %s23 = sadd.s32 1, %s19
    $region7: #{tpu_custom_call.1} parent=1 // loop_footer_branch
      %18 = sbr.rel target = $region3
    $region8: #{tpu_custom_call.1} parent=1 // loop_exit
      _

</llo_original>
